<compile_context>
chip_gen: v5e
topology: v5e:2x2
jax: 0.10.0
libtpu: 0.0.40
codegen_flags: <defaults>
</compile_context>

<pallas_src>
import functools

import jax
import jax.numpy as jnp
from jax.experimental import pallas as pl
from jax.experimental.pallas import tpu as pltpu


# ---------------------------------------------------------------------------
# Fused kernel: num_layers x LSTM (wavefront) -> last step -> ReLU -> fc
#               -> ReLU -> fc_out -> Softmax(dim=1), one invocation per shard.
# ---------------------------------------------------------------------------
def fused_lstm_model_kernel(x_ref, *refs, num_layers, hidden, seq_len, mxu_dtype):
    H = hidden
    T = seq_len
    layer_refs = refs[:3 * num_layers]
    w_fc_ref, b_fc_ref, w_out_ref, b_out_ref, out_ref = refs[3 * num_layers:]

    TB = x_ref.shape[1]          # T * Bs (time-major rows)
    Bs = TB // T

    # Load weights once as loop-invariant values: the RHS of every recurrent
    # dot is the same across the unrolled steps, letting Mosaic hoist the MXU
    # weight-staging push out of the recurrence.  Escalate to explicit
    # pltpu.matmul_push_rhs / matmul_acc_lhs / matmul_pop only if the bundle
    # dump shows a per-step RHS push.
    w_ih = [layer_refs[3 * l + 0][...] for l in range(num_layers)]
    w_hh = [layer_refs[3 * l + 1][...] for l in range(num_layers)]
    bias = [layer_refs[3 * l + 2][...] for l in range(num_layers)]

    def cell_step(z_in, h, c, whh):
        # z_in already holds x_t @ W_ih^T + (b_ih + b_hh); only h @ W_hh is on
        # the sequential critical path.
        z = z_in + jnp.dot(h.astype(mxu_dtype), whh,
                           preferred_element_type=jnp.float32)        # (Bs, 4H)
        # Full-width transcendentals on the 128-lane gate vector (EUP slot),
        # then static lane slices per gate (PyTorch order: i, f, g, o).
        sg = jax.nn.sigmoid(z)
        tg = jnp.tanh(z)
        i_g = sg[:, 0 * H:1 * H]
        f_g = sg[:, 1 * H:2 * H]
        g_g = tg[:, 2 * H:3 * H]
        o_g = sg[:, 3 * H:4 * H]
        c_new = f_g * c + i_g * g_g
        h_new = o_g * jnp.tanh(c_new)
        return h_new, c_new

    # Layer-0 input projection hoisted off the recurrence: one batched MXU
    # matmul over all T time-major rows, bias folded in.  Each per-step slice
    # below is a contiguous sublane block (no strided gather, no relayout).
    x2d = x_ref[0]                                                     # (T*Bs, D)
    zx0 = (jnp.dot(x2d.astype(mxu_dtype), w_ih[0],
                   preferred_element_type=jnp.float32) + bias[0])      # (T*Bs, 4H)

    h = [jnp.zeros((Bs, H), jnp.float32) for _ in range(num_layers)]
    c = [jnp.zeros((Bs, H), jnp.float32) for _ in range(num_layers)]

    # Wavefront schedule over layers: at global step s, layer l processes time
    # t = s - l, consuming layer l-1's output from step s-1 (snapshot h_in).
    # The per-layer cell updates within a step are independent -> overlapped
    # MXU/EUP latency; serial depth = T + L - 1 instead of T * L.
    # Fully unrolled (fine at T=8).  Scaling guard: for large T/H, move to
    # lax.fori_loop(..., unroll=True) over chunks and park zx0 in a VMEM
    # scratch sliced with pl.ds(pl.multiple_of(t * Bs, Bs), Bs) so vreg live
    # ranges stay bounded.
    for s in range(T + num_layers - 1):
        h_in = list(h)                     # outputs as of the end of step s-1
        for l in range(num_layers):
            t = s - l
            if 0 <= t < T:
                if l == 0:
                    z_in = zx0[t * Bs:(t + 1) * Bs, :]
                else:
                    # Per-step input projection for deeper layers: fills MXU
                    # slots that are otherwise idle during the wavefront.
                    z_in = (jnp.dot(h_in[l - 1].astype(mxu_dtype), w_ih[l],
                                    preferred_element_type=jnp.float32)
                            + bias[l])
                h[l], c[l] = cell_step(z_in, h[l], c[l], w_hh[l])
    # TODO(synk): inter-layer dropout (p=0.5) is a training-only op; this
    # implements eval-mode semantics (dropout disabled).

    # Head on the last step of the last layer:
    # ReLU -> fc -> ReLU -> fc_out -> Softmax(dim=1).  Off the critical path,
    # so exact softmax division (tight row sums) instead of approx reciprocal.
    y = jnp.maximum(h[num_layers - 1], 0.0)
    y = (jnp.dot(y.astype(mxu_dtype), w_fc_ref[...],
                 preferred_element_type=jnp.float32) + b_fc_ref[...])
    y = jnp.maximum(y, 0.0)
    logits = (jnp.dot(y.astype(mxu_dtype), w_out_ref[...],
                      preferred_element_type=jnp.float32) + b_out_ref[...])
    logits = logits - jnp.max(logits, axis=1, keepdims=True)
    e = jnp.exp(logits)
    probs = e / jnp.sum(e, axis=1, keepdims=True)
    out_ref[0] = probs.astype(out_ref.dtype)


# ---------------------------------------------------------------------------
# Wrapper: parameter plumbing + one pallas_call for the whole model.
# ---------------------------------------------------------------------------
def lstm_model_forward(x_btd, params, *, batch_shards=1, mxu_dtype=jnp.float32):
    """x_btd: (B, T, input_size) batch_first, like the PyTorch module.

    batch_shards: leading "parallel" grid axis (v7x megacore).  Gated: only
      honored when each shard keeps >= 8 batch rows; below that, sharding the
      serial T-step chain is pure overhead, so we fall back to 1.
    mxu_dtype: dtype of weights / dot operands (accumulation stays f32).  Use
      jnp.bfloat16 on v6e/v7x for native MXU rate + halved weight VMEM once
      H grows; keep f32 at toy sizes / on v5e activations.
    """
    B, T, D = x_btd.shape
    num_layers = len(params["lstm"])
    H = params["lstm"][0]["w_hh_t"].shape[0]
    O = params["w_out_t"].shape[1]

    if batch_shards > 1 and (B % batch_shards != 0 or B // batch_shards < 8):
        batch_shards = 1
    Bs = B // batch_shards

    # Time-major, shard-major layout: row (t*Bs + b) of shard i is x[i*Bs+b, t].
    # Tiny one-off rearrange in XLA, off the recurrent critical path.
    x_tm = (x_btd.astype(jnp.float32)
            .reshape(batch_shards, Bs, T, D)
            .transpose(0, 2, 1, 3)
            .reshape(batch_shards, T * Bs, D))

    wd = jnp.dtype(mxu_dtype)
    kernel = functools.partial(fused_lstm_model_kernel,
                               num_layers=num_layers, hidden=H, seq_len=T,
                               mxu_dtype=wd)

    in_specs = [pl.BlockSpec((1, T * Bs, D), lambda i: (i, 0, 0))]
    args = [x_tm]
    for layer in params["lstm"]:
        d_in = layer["w_ih_t"].shape[0]
        in_specs += [
            pl.BlockSpec((d_in, 4 * H), lambda i: (0, 0)),
            pl.BlockSpec((H, 4 * H), lambda i: (0, 0)),
            pl.BlockSpec((1, 4 * H), lambda i: (0, 0)),
        ]
        args += [layer["w_ih_t"].astype(wd), layer["w_hh_t"].astype(wd),
                 layer["b"].astype(jnp.float32)]
    in_specs += [
        pl.BlockSpec((H, H), lambda i: (0, 0)),
        pl.BlockSpec((1, H), lambda i: (0, 0)),
        pl.BlockSpec((H, O), lambda i: (0, 0)),
        pl.BlockSpec((1, O), lambda i: (0, 0)),
    ]
    args += [params["w_fc_t"].astype(wd), params["b_fc"].astype(jnp.float32),
             params["w_out_t"].astype(wd), params["b_out"].astype(jnp.float32)]

    out = pl.pallas_call(
        kernel,
        out_shape=jax.ShapeDtypeStruct((batch_shards, Bs, O), jnp.float32),
        grid_spec=pltpu.PrefetchScalarGridSpec(
            num_scalar_prefetch=0,
            grid=(batch_shards,),
            in_specs=in_specs,
            out_specs=pl.BlockSpec((1, Bs, O), lambda i: (i, 0, 0)),
        ),
        compiler_params=pltpu.CompilerParams(
            # Batch shards are independent -> "parallel" lets v7x split them
            # across both TensorCores; no-op on single-TC v5e/v6e.
            dimension_semantics=("parallel",),
            # Explicit scoped-VMEM ceiling (well under v7x's 64 MiB physical).
            # Re-derive (and consider single-buffered weight BlockSpecs /
            # bf16 weights) if H/T are scaled up.
            vmem_limit_bytes=32 * 1024 * 1024,
        ),
    )(*args)
    return out.reshape(B, O)


# ---------------------------------------------------------------------------
# Parameter init (PyTorch-style uniform) + pure-JAX reference for validation.
# ---------------------------------------------------------------------------
def init_params(key, input_size, hidden_size, output_size, num_layers):
    H = hidden_size
    k = 1.0 / jnp.sqrt(jnp.float32(H))
    params = {"lstm": []}
    for layer in range(num_layers):
        d_in = input_size if layer == 0 else H
        key, k1, k2, k3, k4 = jax.random.split(key, 5)
        w_ih = jax.random.uniform(k1, (4 * H, d_in), jnp.float32, -k, k)
        w_hh = jax.random.uniform(k2, (4 * H, H), jnp.float32, -k, k)
        b_ih = jax.random.uniform(k3, (4 * H,), jnp.float32, -k, k)
        b_hh = jax.random.uniform(k4, (4 * H,), jnp.float32, -k, k)
        params["lstm"].append({
            "w_ih_t": w_ih.T,                       # (d_in, 4H)
            "w_hh_t": w_hh.T,                       # (H, 4H)
            "b": (b_ih + b_hh).reshape(1, 4 * H),   # (1, 4H)
        })
    key, k5, k6, k7, k8 = jax.random.split(key, 5)
    w_fc = jax.random.uniform(k5, (H, H), jnp.float32, -k, k)
    b_fc = jax.random.uniform(k6, (H,), jnp.float32, -k, k)
    w_out = jax.random.uniform(k7, (output_size, H), jnp.float32, -k, k)
    b_out = jax.random.uniform(k8, (output_size,), jnp.float32, -k, k)
    params["w_fc_t"] = w_fc.T                       # (H, H)
    params["b_fc"] = b_fc.reshape(1, H)
    params["w_out_t"] = w_out.T                     # (H, O)
    params["b_out"] = b_out.reshape(1, output_size)
    return params


def reference_forward(x, params):
    """Pure-JAX reference matching the PyTorch module (eval mode)."""
    B, T, _ = x.shape
    seq = x.astype(jnp.float32)
    for layer in params["lstm"]:
        H = layer["w_hh_t"].shape[0]
        h = jnp.zeros((B, H), jnp.float32)
        c = jnp.zeros((B, H), jnp.float32)
        outs = []
        for t in range(T):
            z = seq[:, t, :] @ layer["w_ih_t"] + h @ layer["w_hh_t"] + layer["b"]
            i = jax.nn.sigmoid(z[:, 0 * H:1 * H])
            f = jax.nn.sigmoid(z[:, 1 * H:2 * H])
            g = jnp.tanh(z[:, 2 * H:3 * H])
            o = jax.nn.sigmoid(z[:, 3 * H:4 * H])
            c = f * c + i * g
            h = o * jnp.tanh(c)
            outs.append(h)
        seq = jnp.stack(outs, axis=1)
    y = jnp.maximum(seq[:, -1, :], 0.0)
    y = jnp.maximum(y @ params["w_fc_t"] + params["b_fc"], 0.0)
    logits = y @ params["w_out_t"] + params["b_out"]
    return jax.nn.softmax(logits, axis=1)


if __name__ == "__main__":
    INPUT_SIZE, HIDDEN, OUTPUT, LAYERS = 16, 32, 8, 2
    BATCH, SEQ = 2, 8

    key = jax.random.PRNGKey(0)
    key, kx, kp = jax.random.split(key, 3)
    x = jax.random.normal(kx, (BATCH, SEQ, INPUT_SIZE), jnp.float32)
    params = init_params(kp, INPUT_SIZE, HIDDEN, OUTPUT, LAYERS)

    # f32 path (all chips).
    out = jax.block_until_ready(lstm_model_forward(x, params))
    assert out.shape == (BATCH, OUTPUT)
    # exact softmax division -> tight row sums
    assert jnp.allclose(jnp.sum(out, axis=1), 1.0, atol=1e-3)
    ref = jax.block_until_ready(reference_forward(x, params))
    assert jnp.allclose(out, ref, atol=1e-2)

    # Megacore path (v7x): exercised only with >= 8 batch rows per shard.
    B2 = 16
    key, kx2 = jax.random.split(key)
    x2 = jax.random.normal(kx2, (B2, SEQ, INPUT_SIZE), jnp.float32)
    out2 = jax.block_until_ready(lstm_model_forward(x2, params, batch_shards=2))
    ref2 = jax.block_until_ready(reference_forward(x2, params))
    assert out2.shape == (B2, OUTPUT)
    assert jnp.allclose(out2, ref2, atol=1e-2)

    # bf16 MXU path (v6e/v7x): bf16 weights / dot operands, f32 accumulation.
    out3 = jax.block_until_ready(
        lstm_model_forward(x, params, mxu_dtype=jnp.bfloat16))
    assert out3.shape == (BATCH, OUTPUT)
    assert jnp.allclose(jnp.sum(out3, axis=1), 1.0, atol=1e-3)
    assert jnp.allclose(out3, out, atol=1e-1)

    print("KERNEL_OK")
</pallas_src>

<mosaic_0001>
module attributes {stable_mosaic.version = 11 : i64} {
  func.func @fused_lstm_model_kernel(%arg0: i32, %arg1: memref<1x16x16xf32, #tpu.memory_space<vmem>>, %arg2: memref<16x128xf32, #tpu.memory_space<vmem>>, %arg3: memref<32x128xf32, #tpu.memory_space<vmem>>, %arg4: memref<1x128xf32, #tpu.memory_space<vmem>>, %arg5: memref<32x128xf32, #tpu.memory_space<vmem>>, %arg6: memref<32x128xf32, #tpu.memory_space<vmem>>, %arg7: memref<1x128xf32, #tpu.memory_space<vmem>>, %arg8: memref<32x32xf32, #tpu.memory_space<vmem>>, %arg9: memref<1x32xf32, #tpu.memory_space<vmem>>, %arg10: memref<32x8xf32, #tpu.memory_space<vmem>>, %arg11: memref<1x8xf32, #tpu.memory_space<vmem>>, %arg12: memref<1x2x8xf32, #tpu.memory_space<vmem>>) attributes {dimension_semantics = [#tpu.dimension_semantics<parallel>], iteration_bounds = array<i64: 1>, scalar_prefetch = 0 : i64, scratch_operands = 0 : i64, tpu.core_type = #tpu.core_type<tc>, window_params = [{transform_indices = @transform_0, window_bounds = array<i64: 1, 16, 16>}, {pipeline_mode = #tpu.pipeline_mode<synchronous>, transform_indices = @transform_1, window_bounds = array<i64: 16, 128>}, {pipeline_mode = #tpu.pipeline_mode<synchronous>, transform_indices = @transform_2, window_bounds = array<i64: 32, 128>}, {pipeline_mode = #tpu.pipeline_mode<synchronous>, transform_indices = @transform_3, window_bounds = array<i64: 1, 128>}, {pipeline_mode = #tpu.pipeline_mode<synchronous>, transform_indices = @transform_4, window_bounds = array<i64: 32, 128>}, {pipeline_mode = #tpu.pipeline_mode<synchronous>, transform_indices = @transform_5, window_bounds = array<i64: 32, 128>}, {pipeline_mode = #tpu.pipeline_mode<synchronous>, transform_indices = @transform_6, window_bounds = array<i64: 1, 128>}, {pipeline_mode = #tpu.pipeline_mode<synchronous>, transform_indices = @transform_7, window_bounds = array<i64: 32, 32>}, {pipeline_mode = #tpu.pipeline_mode<synchronous>, transform_indices = @transform_8, window_bounds = array<i64: 1, 32>}, {pipeline_mode = #tpu.pipeline_mode<synchronous>, transform_indices = @transform_9, window_bounds = array<i64: 32, 8>}, {pipeline_mode = #tpu.pipeline_mode<synchronous>, transform_indices = @transform_10, window_bounds = array<i64: 1, 8>}, {transform_indices = @transform_11, window_bounds = array<i64: 1, 2, 8>}]} {
    %c0 = arith.constant 0 : index
    %c0_0 = arith.constant 0 : index
    %0 = vector.load %arg2[%c0, %c0_0] : memref<16x128xf32, #tpu.memory_space<vmem>>, vector<16x128xf32>
    %c0_1 = arith.constant 0 : index
    %c0_2 = arith.constant 0 : index
    %1 = vector.load %arg5[%c0_1, %c0_2] : memref<32x128xf32, #tpu.memory_space<vmem>>, vector<32x128xf32>
    %c0_3 = arith.constant 0 : index
    %c0_4 = arith.constant 0 : index
    %2 = vector.load %arg3[%c0_3, %c0_4] : memref<32x128xf32, #tpu.memory_space<vmem>>, vector<32x128xf32>
    %c0_5 = arith.constant 0 : index
    %c0_6 = arith.constant 0 : index
    %3 = vector.load %arg6[%c0_5, %c0_6] : memref<32x128xf32, #tpu.memory_space<vmem>>, vector<32x128xf32>
    %c0_7 = arith.constant 0 : index
    %c0_8 = arith.constant 0 : index
    %4 = vector.load %arg4[%c0_7, %c0_8] : memref<1x128xf32, #tpu.memory_space<vmem>>, vector<1x128xf32>
    %c0_9 = arith.constant 0 : index
    %c0_10 = arith.constant 0 : index
    %5 = vector.load %arg7[%c0_9, %c0_10] : memref<1x128xf32, #tpu.memory_space<vmem>>, vector<1x128xf32>
    %c0_11 = arith.constant 0 : index
    %c0_12 = arith.constant 0 : index
    %c0_13 = arith.constant 0 : index
    %6 = vector.load %arg1[%c0_11, %c0_12, %c0_13] : memref<1x16x16xf32, #tpu.memory_space<vmem>>, vector<1x16x16xf32>
    %7 = vector.shape_cast %6 : vector<1x16x16xf32> to vector<16x16xf32>
    %cst = arith.constant dense<0.000000e+00> : vector<16x128xf32>
    %8 = tpu.matmul %7, %0, %cst {dimension_numbers = #tpu.dot_dimension_numbers<[1], [0], [0], [1], [0, 0, 1, 1], [], []>} : vector<16x16xf32>, vector<16x128xf32>, vector<16x128xf32> -> vector<16x128xf32>
    %9 = vector.broadcast %4 : vector<1x128xf32> to vector<16x128xf32>
    %10 = arith.addf %8, %9 : vector<16x128xf32>
    %cst_14 = arith.constant 0.000000e+00 : f32
    %11 = vector.broadcast %cst_14 : f32 to vector<2x32xf32>
    %cst_15 = arith.constant 0.000000e+00 : f32
    %12 = vector.broadcast %cst_15 : f32 to vector<2x32xf32>
    %cst_16 = arith.constant 0.000000e+00 : f32
    %13 = vector.broadcast %cst_16 : f32 to vector<2x32xf32>
    %cst_17 = arith.constant 0.000000e+00 : f32
    %14 = vector.broadcast %cst_17 : f32 to vector<2x32xf32>
    %15 = vector.extract_strided_slice %10 {offsets = [0, 0], sizes = [2, 128], strides = [1, 1]} : vector<16x128xf32> to vector<2x128xf32>
    %cst_18 = arith.constant dense<0.000000e+00> : vector<2x128xf32>
    %16 = tpu.matmul %11, %2, %cst_18 {dimension_numbers = #tpu.dot_dimension_numbers<[1], [0], [0], [1], [0, 0, 1, 1], [], []>} : vector<2x32xf32>, vector<32x128xf32>, vector<2x128xf32> -> vector<2x128xf32>
    %17 = arith.addf %15, %16 : vector<2x128xf32>
    %18 = arith.negf %17 : vector<2x128xf32>
    %19 = math.exp %18 : vector<2x128xf32>
    %cst_19 = arith.constant 1.000000e+00 : f32
    %20 = vector.broadcast %cst_19 : f32 to vector<2x128xf32>
    %21 = arith.addf %20, %19 : vector<2x128xf32>
    %22 = arith.divf %20, %21 : vector<2x128xf32>
    %23 = math.tanh %17 : vector<2x128xf32>
    %24 = vector.extract_strided_slice %22 {offsets = [0, 0], sizes = [2, 32], strides = [1, 1]} : vector<2x128xf32> to vector<2x32xf32>
    %25 = vector.extract_strided_slice %22 {offsets = [0, 32], sizes = [2, 32], strides = [1, 1]} : vector<2x128xf32> to vector<2x32xf32>
    %26 = vector.extract_strided_slice %23 {offsets = [0, 64], sizes = [2, 32], strides = [1, 1]} : vector<2x128xf32> to vector<2x32xf32>
    %27 = vector.extract_strided_slice %22 {offsets = [0, 96], sizes = [2, 32], strides = [1, 1]} : vector<2x128xf32> to vector<2x32xf32>
    %28 = arith.mulf %25, %13 : vector<2x32xf32>
    %29 = arith.mulf %24, %26 : vector<2x32xf32>
    %30 = arith.addf %28, %29 : vector<2x32xf32>
    %31 = math.tanh %30 : vector<2x32xf32>
    %32 = arith.mulf %27, %31 : vector<2x32xf32>
    %33 = vector.extract_strided_slice %10 {offsets = [2, 0], sizes = [2, 128], strides = [1, 1]} : vector<16x128xf32> to vector<2x128xf32>
    %cst_20 = arith.constant dense<0.000000e+00> : vector<2x128xf32>
    %34 = tpu.matmul %32, %2, %cst_20 {dimension_numbers = #tpu.dot_dimension_numbers<[1], [0], [0], [1], [0, 0, 1, 1], [], []>} : vector<2x32xf32>, vector<32x128xf32>, vector<2x128xf32> -> vector<2x128xf32>
    %35 = arith.addf %33, %34 : vector<2x128xf32>
    %36 = arith.negf %35 : vector<2x128xf32>
    %37 = math.exp %36 : vector<2x128xf32>
    %cst_21 = arith.constant 1.000000e+00 : f32
    %38 = vector.broadcast %cst_21 : f32 to vector<2x128xf32>
    %39 = arith.addf %38, %37 : vector<2x128xf32>
    %40 = arith.divf %38, %39 : vector<2x128xf32>
    %41 = math.tanh %35 : vector<2x128xf32>
    %42 = vector.extract_strided_slice %40 {offsets = [0, 0], sizes = [2, 32], strides = [1, 1]} : vector<2x128xf32> to vector<2x32xf32>
    %43 = vector.extract_strided_slice %40 {offsets = [0, 32], sizes = [2, 32], strides = [1, 1]} : vector<2x128xf32> to vector<2x32xf32>
    %44 = vector.extract_strided_slice %41 {offsets = [0, 64], sizes = [2, 32], strides = [1, 1]} : vector<2x128xf32> to vector<2x32xf32>
    %45 = vector.extract_strided_slice %40 {offsets = [0, 96], sizes = [2, 32], strides = [1, 1]} : vector<2x128xf32> to vector<2x32xf32>
    %46 = arith.mulf %43, %30 : vector<2x32xf32>
    %47 = arith.mulf %42, %44 : vector<2x32xf32>
    %48 = arith.addf %46, %47 : vector<2x32xf32>
    %49 = math.tanh %48 : vector<2x32xf32>
    %50 = arith.mulf %45, %49 : vector<2x32xf32>
    %cst_22 = arith.constant dense<0.000000e+00> : vector<2x128xf32>
    %51 = tpu.matmul %32, %1, %cst_22 {dimension_numbers = #tpu.dot_dimension_numbers<[1], [0], [0], [1], [0, 0, 1, 1], [], []>} : vector<2x32xf32>, vector<32x128xf32>, vector<2x128xf32> -> vector<2x128xf32>
    %52 = vector.broadcast %5 : vector<1x128xf32> to vector<2x128xf32>
    %53 = arith.addf %51, %52 : vector<2x128xf32>
    %cst_23 = arith.constant dense<0.000000e+00> : vector<2x128xf32>
    %54 = tpu.matmul %12, %3, %cst_23 {dimension_numbers = #tpu.dot_dimension_numbers<[1], [0], [0], [1], [0, 0, 1, 1], [], []>} : vector<2x32xf32>, vector<32x128xf32>, vector<2x128xf32> -> vector<2x128xf32>
    %55 = arith.addf %53, %54 : vector<2x128xf32>
    %56 = arith.negf %55 : vector<2x128xf32>
    %57 = math.exp %56 : vector<2x128xf32>
    %cst_24 = arith.constant 1.000000e+00 : f32
    %58 = vector.broadcast %cst_24 : f32 to vector<2x128xf32>
    %59 = arith.addf %58, %57 : vector<2x128xf32>
    %60 = arith.divf %58, %59 : vector<2x128xf32>
    %61 = math.tanh %55 : vector<2x128xf32>
    %62 = vector.extract_strided_slice %60 {offsets = [0, 0], sizes = [2, 32], strides = [1, 1]} : vector<2x128xf32> to vector<2x32xf32>
    %63 = vector.extract_strided_slice %60 {offsets = [0, 32], sizes = [2, 32], strides = [1, 1]} : vector<2x128xf32> to vector<2x32xf32>
    %64 = vector.extract_strided_slice %61 {offsets = [0, 64], sizes = [2, 32], strides = [1, 1]} : vector<2x128xf32> to vector<2x32xf32>
    %65 = vector.extract_strided_slice %60 {offsets = [0, 96], sizes = [2, 32], strides = [1, 1]} : vector<2x128xf32> to vector<2x32xf32>
    %66 = arith.mulf %63, %14 : vector<2x32xf32>
    %67 = arith.mulf %62, %64 : vector<2x32xf32>
    %68 = arith.addf %66, %67 : vector<2x32xf32>
    %69 = math.tanh %68 : vector<2x32xf32>
    %70 = arith.mulf %65, %69 : vector<2x32xf32>
    %71 = vector.extract_strided_slice %10 {offsets = [4, 0], sizes = [2, 128], strides = [1, 1]} : vector<16x128xf32> to vector<2x128xf32>
    %cst_25 = arith.constant dense<0.000000e+00> : vector<2x128xf32>
    %72 = tpu.matmul %50, %2, %cst_25 {dimension_numbers = #tpu.dot_dimension_numbers<[1], [0], [0], [1], [0, 0, 1, 1], [], []>} : vector<2x32xf32>, vector<32x128xf32>, vector<2x128xf32> -> vector<2x128xf32>
    %73 = arith.addf %71, %72 : vector<2x128xf32>
    %74 = arith.negf %73 : vector<2x128xf32>
    %75 = math.exp %74 : vector<2x128xf32>
    %cst_26 = arith.constant 1.000000e+00 : f32
    %76 = vector.broadcast %cst_26 : f32 to vector<2x128xf32>
    %77 = arith.addf %76, %75 : vector<2x128xf32>
    %78 = arith.divf %76, %77 : vector<2x128xf32>
    %79 = math.tanh %73 : vector<2x128xf32>
    %80 = vector.extract_strided_slice %78 {offsets = [0, 0], sizes = [2, 32], strides = [1, 1]} : vector<2x128xf32> to vector<2x32xf32>
    %81 = vector.extract_strided_slice %78 {offsets = [0, 32], sizes = [2, 32], strides = [1, 1]} : vector<2x128xf32> to vector<2x32xf32>
    %82 = vector.extract_strided_slice %79 {offsets = [0, 64], sizes = [2, 32], strides = [1, 1]} : vector<2x128xf32> to vector<2x32xf32>
    %83 = vector.extract_strided_slice %78 {offsets = [0, 96], sizes = [2, 32], strides = [1, 1]} : vector<2x128xf32> to vector<2x32xf32>
    %84 = arith.mulf %81, %48 : vector<2x32xf32>
    %85 = arith.mulf %80, %82 : vector<2x32xf32>
    %86 = arith.addf %84, %85 : vector<2x32xf32>
    %87 = math.tanh %86 : vector<2x32xf32>
    %88 = arith.mulf %83, %87 : vector<2x32xf32>
    %cst_27 = arith.constant dense<0.000000e+00> : vector<2x128xf32>
    %89 = tpu.matmul %50, %1, %cst_27 {dimension_numbers = #tpu.dot_dimension_numbers<[1], [0], [0], [1], [0, 0, 1, 1], [], []>} : vector<2x32xf32>, vector<32x128xf32>, vector<2x128xf32> -> vector<2x128xf32>
    %90 = vector.broadcast %5 : vector<1x128xf32> to vector<2x128xf32>
    %91 = arith.addf %89, %90 : vector<2x128xf32>
    %cst_28 = arith.constant dense<0.000000e+00> : vector<2x128xf32>
    %92 = tpu.matmul %70, %3, %cst_28 {dimension_numbers = #tpu.dot_dimension_numbers<[1], [0], [0], [1], [0, 0, 1, 1], [], []>} : vector<2x32xf32>, vector<32x128xf32>, vector<2x128xf32> -> vector<2x128xf32>
    %93 = arith.addf %91, %92 : vector<2x128xf32>
    %94 = arith.negf %93 : vector<2x128xf32>
    %95 = math.exp %94 : vector<2x128xf32>
    %cst_29 = arith.constant 1.000000e+00 : f32
    %96 = vector.broadcast %cst_29 : f32 to vector<2x128xf32>
    %97 = arith.addf %96, %95 : vector<2x128xf32>
    %98 = arith.divf %96, %97 : vector<2x128xf32>
    %99 = math.tanh %93 : vector<2x128xf32>
    %100 = vector.extract_strided_slice %98 {offsets = [0, 0], sizes = [2, 32], strides = [1, 1]} : vector<2x128xf32> to vector<2x32xf32>
    %101 = vector.extract_strided_slice %98 {offsets = [0, 32], sizes = [2, 32], strides = [1, 1]} : vector<2x128xf32> to vector<2x32xf32>
    %102 = vector.extract_strided_slice %99 {offsets = [0, 64], sizes = [2, 32], strides = [1, 1]} : vector<2x128xf32> to vector<2x32xf32>
    %103 = vector.extract_strided_slice %98 {offsets = [0, 96], sizes = [2, 32], strides = [1, 1]} : vector<2x128xf32> to vector<2x32xf32>
    %104 = arith.mulf %101, %68 : vector<2x32xf32>
    %105 = arith.mulf %100, %102 : vector<2x32xf32>
    %106 = arith.addf %104, %105 : vector<2x32xf32>
    %107 = math.tanh %106 : vector<2x32xf32>
    %108 = arith.mulf %103, %107 : vector<2x32xf32>
    %109 = vector.extract_strided_slice %10 {offsets = [6, 0], sizes = [2, 128], strides = [1, 1]} : vector<16x128xf32> to vector<2x128xf32>
    %cst_30 = arith.constant dense<0.000000e+00> : vector<2x128xf32>
    %110 = tpu.matmul %88, %2, %cst_30 {dimension_numbers = #tpu.dot_dimension_numbers<[1], [0], [0], [1], [0, 0, 1, 1], [], []>} : vector<2x32xf32>, vector<32x128xf32>, vector<2x128xf32> -> vector<2x128xf32>
    %111 = arith.addf %109, %110 : vector<2x128xf32>
    %112 = arith.negf %111 : vector<2x128xf32>
    %113 = math.exp %112 : vector<2x128xf32>
    %cst_31 = arith.constant 1.000000e+00 : f32
    %114 = vector.broadcast %cst_31 : f32 to vector<2x128xf32>
    %115 = arith.addf %114, %113 : vector<2x128xf32>
    %116 = arith.divf %114, %115 : vector<2x128xf32>
    %117 = math.tanh %111 : vector<2x128xf32>
    %118 = vector.extract_strided_slice %116 {offsets = [0, 0], sizes = [2, 32], strides = [1, 1]} : vector<2x128xf32> to vector<2x32xf32>
    %119 = vector.extract_strided_slice %116 {offsets = [0, 32], sizes = [2, 32], strides = [1, 1]} : vector<2x128xf32> to vector<2x32xf32>
    %120 = vector.extract_strided_slice %117 {offsets = [0, 64], sizes = [2, 32], strides = [1, 1]} : vector<2x128xf32> to vector<2x32xf32>
    %121 = vector.extract_strided_slice %116 {offsets = [0, 96], sizes = [2, 32], strides = [1, 1]} : vector<2x128xf32> to vector<2x32xf32>
    %122 = arith.mulf %119, %86 : vector<2x32xf32>
    %123 = arith.mulf %118, %120 : vector<2x32xf32>
    %124 = arith.addf %122, %123 : vector<2x32xf32>
    %125 = math.tanh %124 : vector<2x32xf32>
    %126 = arith.mulf %121, %125 : vector<2x32xf32>
    %cst_32 = arith.constant dense<0.000000e+00> : vector<2x128xf32>
    %127 = tpu.matmul %88, %1, %cst_32 {dimension_numbers = #tpu.dot_dimension_numbers<[1], [0], [0], [1], [0, 0, 1, 1], [], []>} : vector<2x32xf32>, vector<32x128xf32>, vector<2x128xf32> -> vector<2x128xf32>
    %128 = vector.broadcast %5 : vector<1x128xf32> to vector<2x128xf32>
    %129 = arith.addf %127, %128 : vector<2x128xf32>
    %cst_33 = arith.constant dense<0.000000e+00> : vector<2x128xf32>
    %130 = tpu.matmul %108, %3, %cst_33 {dimension_numbers = #tpu.dot_dimension_numbers<[1], [0], [0], [1], [0, 0, 1, 1], [], []>} : vector<2x32xf32>, vector<32x128xf32>, vector<2x128xf32> -> vector<2x128xf32>
    %131 = arith.addf %129, %130 : vector<2x128xf32>
    %132 = arith.negf %131 : vector<2x128xf32>
    %133 = math.exp %132 : vector<2x128xf32>
    %cst_34 = arith.constant 1.000000e+00 : f32
    %134 = vector.broadcast %cst_34 : f32 to vector<2x128xf32>
    %135 = arith.addf %134, %133 : vector<2x128xf32>
    %136 = arith.divf %134, %135 : vector<2x128xf32>
    %137 = math.tanh %131 : vector<2x128xf32>
    %138 = vector.extract_strided_slice %136 {offsets = [0, 0], sizes = [2, 32], strides = [1, 1]} : vector<2x128xf32> to vector<2x32xf32>
    %139 = vector.extract_strided_slice %136 {offsets = [0, 32], sizes = [2, 32], strides = [1, 1]} : vector<2x128xf32> to vector<2x32xf32>
    %140 = vector.extract_strided_slice %137 {offsets = [0, 64], sizes = [2, 32], strides = [1, 1]} : vector<2x128xf32> to vector<2x32xf32>
    %141 = vector.extract_strided_slice %136 {offsets = [0, 96], sizes = [2, 32], strides = [1, 1]} : vector<2x128xf32> to vector<2x32xf32>
    %142 = arith.mulf %139, %106 : vector<2x32xf32>
    %143 = arith.mulf %138, %140 : vector<2x32xf32>
    %144 = arith.addf %142, %143 : vector<2x32xf32>
    %145 = math.tanh %144 : vector<2x32xf32>
    %146 = arith.mulf %141, %145 : vector<2x32xf32>
    %147 = vector.extract_strided_slice %10 {offsets = [8, 0], sizes = [2, 128], strides = [1, 1]} : vector<16x128xf32> to vector<2x128xf32>
    %cst_35 = arith.constant dense<0.000000e+00> : vector<2x128xf32>
    %148 = tpu.matmul %126, %2, %cst_35 {dimension_numbers = #tpu.dot_dimension_numbers<[1], [0], [0], [1], [0, 0, 1, 1], [], []>} : vector<2x32xf32>, vector<32x128xf32>, vector<2x128xf32> -> vector<2x128xf32>
    %149 = arith.addf %147, %148 : vector<2x128xf32>
    %150 = arith.negf %149 : vector<2x128xf32>
    %151 = math.exp %150 : vector<2x128xf32>
    %cst_36 = arith.constant 1.000000e+00 : f32
    %152 = vector.broadcast %cst_36 : f32 to vector<2x128xf32>
    %153 = arith.addf %152, %151 : vector<2x128xf32>
    %154 = arith.divf %152, %153 : vector<2x128xf32>
    %155 = math.tanh %149 : vector<2x128xf32>
    %156 = vector.extract_strided_slice %154 {offsets = [0, 0], sizes = [2, 32], strides = [1, 1]} : vector<2x128xf32> to vector<2x32xf32>
    %157 = vector.extract_strided_slice %154 {offsets = [0, 32], sizes = [2, 32], strides = [1, 1]} : vector<2x128xf32> to vector<2x32xf32>
    %158 = vector.extract_strided_slice %155 {offsets = [0, 64], sizes = [2, 32], strides = [1, 1]} : vector<2x128xf32> to vector<2x32xf32>
    %159 = vector.extract_strided_slice %154 {offsets = [0, 96], sizes = [2, 32], strides = [1, 1]} : vector<2x128xf32> to vector<2x32xf32>
    %160 = arith.mulf %157, %124 : vector<2x32xf32>
    %161 = arith.mulf %156, %158 : vector<2x32xf32>
    %162 = arith.addf %160, %161 : vector<2x32xf32>
    %163 = math.tanh %162 : vector<2x32xf32>
    %164 = arith.mulf %159, %163 : vector<2x32xf32>
    %cst_37 = arith.constant dense<0.000000e+00> : vector<2x128xf32>
    %165 = tpu.matmul %126, %1, %cst_37 {dimension_numbers = #tpu.dot_dimension_numbers<[1], [0], [0], [1], [0, 0, 1, 1], [], []>} : vector<2x32xf32>, vector<32x128xf32>, vector<2x128xf32> -> vector<2x128xf32>
    %166 = vector.broadcast %5 : vector<1x128xf32> to vector<2x128xf32>
    %167 = arith.addf %165, %166 : vector<2x128xf32>
    %cst_38 = arith.constant dense<0.000000e+00> : vector<2x128xf32>
    %168 = tpu.matmul %146, %3, %cst_38 {dimension_numbers = #tpu.dot_dimension_numbers<[1], [0], [0], [1], [0, 0, 1, 1], [], []>} : vector<2x32xf32>, vector<32x128xf32>, vector<2x128xf32> -> vector<2x128xf32>
    %169 = arith.addf %167, %168 : vector<2x128xf32>
    %170 = arith.negf %169 : vector<2x128xf32>
    %171 = math.exp %170 : vector<2x128xf32>
    %cst_39 = arith.constant 1.000000e+00 : f32
    %172 = vector.broadcast %cst_39 : f32 to vector<2x128xf32>
    %173 = arith.addf %172, %171 : vector<2x128xf32>
    %174 = arith.divf %172, %173 : vector<2x128xf32>
    %175 = math.tanh %169 : vector<2x128xf32>
    %176 = vector.extract_strided_slice %174 {offsets = [0, 0], sizes = [2, 32], strides = [1, 1]} : vector<2x128xf32> to vector<2x32xf32>
    %177 = vector.extract_strided_slice %174 {offsets = [0, 32], sizes = [2, 32], strides = [1, 1]} : vector<2x128xf32> to vector<2x32xf32>
    %178 = vector.extract_strided_slice %175 {offsets = [0, 64], sizes = [2, 32], strides = [1, 1]} : vector<2x128xf32> to vector<2x32xf32>
    %179 = vector.extract_strided_slice %174 {offsets = [0, 96], sizes = [2, 32], strides = [1, 1]} : vector<2x128xf32> to vector<2x32xf32>
    %180 = arith.mulf %177, %144 : vector<2x32xf32>
    %181 = arith.mulf %176, %178 : vector<2x32xf32>
    %182 = arith.addf %180, %181 : vector<2x32xf32>
    %183 = math.tanh %182 : vector<2x32xf32>
    %184 = arith.mulf %179, %183 : vector<2x32xf32>
    %185 = vector.extract_strided_slice %10 {offsets = [10, 0], sizes = [2, 128], strides = [1, 1]} : vector<16x128xf32> to vector<2x128xf32>
    %cst_40 = arith.constant dense<0.000000e+00> : vector<2x128xf32>
    %186 = tpu.matmul %164, %2, %cst_40 {dimension_numbers = #tpu.dot_dimension_numbers<[1], [0], [0], [1], [0, 0, 1, 1], [], []>} : vector<2x32xf32>, vector<32x128xf32>, vector<2x128xf32> -> vector<2x128xf32>
    %187 = arith.addf %185, %186 : vector<2x128xf32>
    %188 = arith.negf %187 : vector<2x128xf32>
    %189 = math.exp %188 : vector<2x128xf32>
    %cst_41 = arith.constant 1.000000e+00 : f32
    %190 = vector.broadcast %cst_41 : f32 to vector<2x128xf32>
    %191 = arith.addf %190, %189 : vector<2x128xf32>
    %192 = arith.divf %190, %191 : vector<2x128xf32>
    %193 = math.tanh %187 : vector<2x128xf32>
    %194 = vector.extract_strided_slice %192 {offsets = [0, 0], sizes = [2, 32], strides = [1, 1]} : vector<2x128xf32> to vector<2x32xf32>
    %195 = vector.extract_strided_slice %192 {offsets = [0, 32], sizes = [2, 32], strides = [1, 1]} : vector<2x128xf32> to vector<2x32xf32>
    %196 = vector.extract_strided_slice %193 {offsets = [0, 64], sizes = [2, 32], strides = [1, 1]} : vector<2x128xf32> to vector<2x32xf32>
    %197 = vector.extract_strided_slice %192 {offsets = [0, 96], sizes = [2, 32], strides = [1, 1]} : vector<2x128xf32> to vector<2x32xf32>
    %198 = arith.mulf %195, %162 : vector<2x32xf32>
    %199 = arith.mulf %194, %196 : vector<2x32xf32>
    %200 = arith.addf %198, %199 : vector<2x32xf32>
    %201 = math.tanh %200 : vector<2x32xf32>
    %202 = arith.mulf %197, %201 : vector<2x32xf32>
    %cst_42 = arith.constant dense<0.000000e+00> : vector<2x128xf32>
    %203 = tpu.matmul %164, %1, %cst_42 {dimension_numbers = #tpu.dot_dimension_numbers<[1], [0], [0], [1], [0, 0, 1, 1], [], []>} : vector<2x32xf32>, vector<32x128xf32>, vector<2x128xf32> -> vector<2x128xf32>
    %204 = vector.broadcast %5 : vector<1x128xf32> to vector<2x128xf32>
    %205 = arith.addf %203, %204 : vector<2x128xf32>
    %cst_43 = arith.constant dense<0.000000e+00> : vector<2x128xf32>
    %206 = tpu.matmul %184, %3, %cst_43 {dimension_numbers = #tpu.dot_dimension_numbers<[1], [0], [0], [1], [0, 0, 1, 1], [], []>} : vector<2x32xf32>, vector<32x128xf32>, vector<2x128xf32> -> vector<2x128xf32>
    %207 = arith.addf %205, %206 : vector<2x128xf32>
    %208 = arith.negf %207 : vector<2x128xf32>
    %209 = math.exp %208 : vector<2x128xf32>
    %cst_44 = arith.constant 1.000000e+00 : f32
    %210 = vector.broadcast %cst_44 : f32 to vector<2x128xf32>
    %211 = arith.addf %210, %209 : vector<2x128xf32>
    %212 = arith.divf %210, %211 : vector<2x128xf32>
    %213 = math.tanh %207 : vector<2x128xf32>
    %214 = vector.extract_strided_slice %212 {offsets = [0, 0], sizes = [2, 32], strides = [1, 1]} : vector<2x128xf32> to vector<2x32xf32>
    %215 = vector.extract_strided_slice %212 {offsets = [0, 32], sizes = [2, 32], strides = [1, 1]} : vector<2x128xf32> to vector<2x32xf32>
    %216 = vector.extract_strided_slice %213 {offsets = [0, 64], sizes = [2, 32], strides = [1, 1]} : vector<2x128xf32> to vector<2x32xf32>
    %217 = vector.extract_strided_slice %212 {offsets = [0, 96], sizes = [2, 32], strides = [1, 1]} : vector<2x128xf32> to vector<2x32xf32>
    %218 = arith.mulf %215, %182 : vector<2x32xf32>
    %219 = arith.mulf %214, %216 : vector<2x32xf32>
    %220 = arith.addf %218, %219 : vector<2x32xf32>
    %221 = math.tanh %220 : vector<2x32xf32>
    %222 = arith.mulf %217, %221 : vector<2x32xf32>
    %223 = vector.extract_strided_slice %10 {offsets = [12, 0], sizes = [2, 128], strides = [1, 1]} : vector<16x128xf32> to vector<2x128xf32>
    %cst_45 = arith.constant dense<0.000000e+00> : vector<2x128xf32>
    %224 = tpu.matmul %202, %2, %cst_45 {dimension_numbers = #tpu.dot_dimension_numbers<[1], [0], [0], [1], [0, 0, 1, 1], [], []>} : vector<2x32xf32>, vector<32x128xf32>, vector<2x128xf32> -> vector<2x128xf32>
    %225 = arith.addf %223, %224 : vector<2x128xf32>
    %226 = arith.negf %225 : vector<2x128xf32>
    %227 = math.exp %226 : vector<2x128xf32>
    %cst_46 = arith.constant 1.000000e+00 : f32
    %228 = vector.broadcast %cst_46 : f32 to vector<2x128xf32>
    %229 = arith.addf %228, %227 : vector<2x128xf32>
    %230 = arith.divf %228, %229 : vector<2x128xf32>
    %231 = math.tanh %225 : vector<2x128xf32>
    %232 = vector.extract_strided_slice %230 {offsets = [0, 0], sizes = [2, 32], strides = [1, 1]} : vector<2x128xf32> to vector<2x32xf32>
    %233 = vector.extract_strided_slice %230 {offsets = [0, 32], sizes = [2, 32], strides = [1, 1]} : vector<2x128xf32> to vector<2x32xf32>
    %234 = vector.extract_strided_slice %231 {offsets = [0, 64], sizes = [2, 32], strides = [1, 1]} : vector<2x128xf32> to vector<2x32xf32>
    %235 = vector.extract_strided_slice %230 {offsets = [0, 96], sizes = [2, 32], strides = [1, 1]} : vector<2x128xf32> to vector<2x32xf32>
    %236 = arith.mulf %233, %200 : vector<2x32xf32>
    %237 = arith.mulf %232, %234 : vector<2x32xf32>
    %238 = arith.addf %236, %237 : vector<2x32xf32>
    %239 = math.tanh %238 : vector<2x32xf32>
    %240 = arith.mulf %235, %239 : vector<2x32xf32>
    %cst_47 = arith.constant dense<0.000000e+00> : vector<2x128xf32>
    %241 = tpu.matmul %202, %1, %cst_47 {dimension_numbers = #tpu.dot_dimension_numbers<[1], [0], [0], [1], [0, 0, 1, 1], [], []>} : vector<2x32xf32>, vector<32x128xf32>, vector<2x128xf32> -> vector<2x128xf32>
    %242 = vector.broadcast %5 : vector<1x128xf32> to vector<2x128xf32>
    %243 = arith.addf %241, %242 : vector<2x128xf32>
    %cst_48 = arith.constant dense<0.000000e+00> : vector<2x128xf32>
    %244 = tpu.matmul %222, %3, %cst_48 {dimension_numbers = #tpu.dot_dimension_numbers<[1], [0], [0], [1], [0, 0, 1, 1], [], []>} : vector<2x32xf32>, vector<32x128xf32>, vector<2x128xf32> -> vector<2x128xf32>
    %245 = arith.addf %243, %244 : vector<2x128xf32>
    %246 = arith.negf %245 : vector<2x128xf32>
    %247 = math.exp %246 : vector<2x128xf32>
    %cst_49 = arith.constant 1.000000e+00 : f32
    %248 = vector.broadcast %cst_49 : f32 to vector<2x128xf32>
    %249 = arith.addf %248, %247 : vector<2x128xf32>
    %250 = arith.divf %248, %249 : vector<2x128xf32>
    %251 = math.tanh %245 : vector<2x128xf32>
    %252 = vector.extract_strided_slice %250 {offsets = [0, 0], sizes = [2, 32], strides = [1, 1]} : vector<2x128xf32> to vector<2x32xf32>
    %253 = vector.extract_strided_slice %250 {offsets = [0, 32], sizes = [2, 32], strides = [1, 1]} : vector<2x128xf32> to vector<2x32xf32>
    %254 = vector.extract_strided_slice %251 {offsets = [0, 64], sizes = [2, 32], strides = [1, 1]} : vector<2x128xf32> to vector<2x32xf32>
    %255 = vector.extract_strided_slice %250 {offsets = [0, 96], sizes = [2, 32], strides = [1, 1]} : vector<2x128xf32> to vector<2x32xf32>
    %256 = arith.mulf %253, %220 : vector<2x32xf32>
    %257 = arith.mulf %252, %254 : vector<2x32xf32>
    %258 = arith.addf %256, %257 : vector<2x32xf32>
    %259 = math.tanh %258 : vector<2x32xf32>
    %260 = arith.mulf %255, %259 : vector<2x32xf32>
    %261 = vector.extract_strided_slice %10 {offsets = [14, 0], sizes = [2, 128], strides = [1, 1]} : vector<16x128xf32> to vector<2x128xf32>
    %cst_50 = arith.constant dense<0.000000e+00> : vector<2x128xf32>
    %262 = tpu.matmul %240, %2, %cst_50 {dimension_numbers = #tpu.dot_dimension_numbers<[1], [0], [0], [1], [0, 0, 1, 1], [], []>} : vector<2x32xf32>, vector<32x128xf32>, vector<2x128xf32> -> vector<2x128xf32>
    %263 = arith.addf %261, %262 : vector<2x128xf32>
    %264 = arith.negf %263 : vector<2x128xf32>
    %265 = math.exp %264 : vector<2x128xf32>
    %cst_51 = arith.constant 1.000000e+00 : f32
    %266 = vector.broadcast %cst_51 : f32 to vector<2x128xf32>
    %267 = arith.addf %266, %265 : vector<2x128xf32>
    %268 = arith.divf %266, %267 : vector<2x128xf32>
    %269 = math.tanh %263 : vector<2x128xf32>
    %270 = vector.extract_strided_slice %268 {offsets = [0, 0], sizes = [2, 32], strides = [1, 1]} : vector<2x128xf32> to vector<2x32xf32>
    %271 = vector.extract_strided_slice %268 {offsets = [0, 32], sizes = [2, 32], strides = [1, 1]} : vector<2x128xf32> to vector<2x32xf32>
    %272 = vector.extract_strided_slice %269 {offsets = [0, 64], sizes = [2, 32], strides = [1, 1]} : vector<2x128xf32> to vector<2x32xf32>
    %273 = vector.extract_strided_slice %268 {offsets = [0, 96], sizes = [2, 32], strides = [1, 1]} : vector<2x128xf32> to vector<2x32xf32>
    %274 = arith.mulf %271, %238 : vector<2x32xf32>
    %275 = arith.mulf %270, %272 : vector<2x32xf32>
    %276 = arith.addf %274, %275 : vector<2x32xf32>
    %277 = math.tanh %276 : vector<2x32xf32>
    %278 = arith.mulf %273, %277 : vector<2x32xf32>
    %cst_52 = arith.constant dense<0.000000e+00> : vector<2x128xf32>
    %279 = tpu.matmul %240, %1, %cst_52 {dimension_numbers = #tpu.dot_dimension_numbers<[1], [0], [0], [1], [0, 0, 1, 1], [], []>} : vector<2x32xf32>, vector<32x128xf32>, vector<2x128xf32> -> vector<2x128xf32>
    %280 = vector.broadcast %5 : vector<1x128xf32> to vector<2x128xf32>
    %281 = arith.addf %279, %280 : vector<2x128xf32>
    %cst_53 = arith.constant dense<0.000000e+00> : vector<2x128xf32>
    %282 = tpu.matmul %260, %3, %cst_53 {dimension_numbers = #tpu.dot_dimension_numbers<[1], [0], [0], [1], [0, 0, 1, 1], [], []>} : vector<2x32xf32>, vector<32x128xf32>, vector<2x128xf32> -> vector<2x128xf32>
    %283 = arith.addf %281, %282 : vector<2x128xf32>
    %284 = arith.negf %283 : vector<2x128xf32>
    %285 = math.exp %284 : vector<2x128xf32>
    %cst_54 = arith.constant 1.000000e+00 : f32
    %286 = vector.broadcast %cst_54 : f32 to vector<2x128xf32>
    %287 = arith.addf %286, %285 : vector<2x128xf32>
    %288 = arith.divf %286, %287 : vector<2x128xf32>
    %289 = math.tanh %283 : vector<2x128xf32>
    %290 = vector.extract_strided_slice %288 {offsets = [0, 0], sizes = [2, 32], strides = [1, 1]} : vector<2x128xf32> to vector<2x32xf32>
    %291 = vector.extract_strided_slice %288 {offsets = [0, 32], sizes = [2, 32], strides = [1, 1]} : vector<2x128xf32> to vector<2x32xf32>
    %292 = vector.extract_strided_slice %289 {offsets = [0, 64], sizes = [2, 32], strides = [1, 1]} : vector<2x128xf32> to vector<2x32xf32>
    %293 = vector.extract_strided_slice %288 {offsets = [0, 96], sizes = [2, 32], strides = [1, 1]} : vector<2x128xf32> to vector<2x32xf32>
    %294 = arith.mulf %291, %258 : vector<2x32xf32>
    %295 = arith.mulf %290, %292 : vector<2x32xf32>
    %296 = arith.addf %294, %295 : vector<2x32xf32>
    %297 = math.tanh %296 : vector<2x32xf32>
    %298 = arith.mulf %293, %297 : vector<2x32xf32>
    %cst_55 = arith.constant dense<0.000000e+00> : vector<2x128xf32>
    %299 = tpu.matmul %278, %1, %cst_55 {dimension_numbers = #tpu.dot_dimension_numbers<[1], [0], [0], [1], [0, 0, 1, 1], [], []>} : vector<2x32xf32>, vector<32x128xf32>, vector<2x128xf32> -> vector<2x128xf32>
    %300 = vector.broadcast %5 : vector<1x128xf32> to vector<2x128xf32>
    %301 = arith.addf %299, %300 : vector<2x128xf32>
    %cst_56 = arith.constant dense<0.000000e+00> : vector<2x128xf32>
    %302 = tpu.matmul %298, %3, %cst_56 {dimension_numbers = #tpu.dot_dimension_numbers<[1], [0], [0], [1], [0, 0, 1, 1], [], []>} : vector<2x32xf32>, vector<32x128xf32>, vector<2x128xf32> -> vector<2x128xf32>
    %303 = arith.addf %301, %302 : vector<2x128xf32>
    %304 = arith.negf %303 : vector<2x128xf32>
    %305 = math.exp %304 : vector<2x128xf32>
    %cst_57 = arith.constant 1.000000e+00 : f32
    %306 = vector.broadcast %cst_57 : f32 to vector<2x128xf32>
    %307 = arith.addf %306, %305 : vector<2x128xf32>
    %308 = arith.divf %306, %307 : vector<2x128xf32>
    %309 = math.tanh %303 : vector<2x128xf32>
    %310 = vector.extract_strided_slice %308 {offsets = [0, 0], sizes = [2, 32], strides = [1, 1]} : vector<2x128xf32> to vector<2x32xf32>
    %311 = vector.extract_strided_slice %308 {offsets = [0, 32], sizes = [2, 32], strides = [1, 1]} : vector<2x128xf32> to vector<2x32xf32>
    %312 = vector.extract_strided_slice %309 {offsets = [0, 64], sizes = [2, 32], strides = [1, 1]} : vector<2x128xf32> to vector<2x32xf32>
    %313 = vector.extract_strided_slice %308 {offsets = [0, 96], sizes = [2, 32], strides = [1, 1]} : vector<2x128xf32> to vector<2x32xf32>
    %314 = arith.mulf %311, %296 : vector<2x32xf32>
    %315 = arith.mulf %310, %312 : vector<2x32xf32>
    %316 = arith.addf %314, %315 : vector<2x32xf32>
    %317 = math.tanh %316 : vector<2x32xf32>
    %318 = arith.mulf %313, %317 : vector<2x32xf32>
    %cst_58 = arith.constant 0.000000e+00 : f32
    %319 = vector.broadcast %cst_58 : f32 to vector<2x32xf32>
    %320 = arith.maximumf %318, %319 : vector<2x32xf32>
    %c0_59 = arith.constant 0 : index
    %c0_60 = arith.constant 0 : index
    %321 = vector.load %arg8[%c0_59, %c0_60] : memref<32x32xf32, #tpu.memory_space<vmem>>, vector<32x32xf32>
    %cst_61 = arith.constant dense<0.000000e+00> : vector<2x32xf32>
    %322 = tpu.matmul %320, %321, %cst_61 {dimension_numbers = #tpu.dot_dimension_numbers<[1], [0], [0], [1], [0, 0, 1, 1], [], []>} : vector<2x32xf32>, vector<32x32xf32>, vector<2x32xf32> -> vector<2x32xf32>
    %c0_62 = arith.constant 0 : index
    %c0_63 = arith.constant 0 : index
    %323 = vector.load %arg9[%c0_62, %c0_63] : memref<1x32xf32, #tpu.memory_space<vmem>>, vector<1x32xf32>
    %324 = vector.broadcast %323 : vector<1x32xf32> to vector<2x32xf32>
    %325 = arith.addf %322, %324 : vector<2x32xf32>
    %cst_64 = arith.constant 0.000000e+00 : f32
    %326 = vector.broadcast %cst_64 : f32 to vector<2x32xf32>
    %327 = arith.maximumf %325, %326 : vector<2x32xf32>
    %c0_65 = arith.constant 0 : index
    %c0_66 = arith.constant 0 : index
    %328 = vector.load %arg10[%c0_65, %c0_66] : memref<32x8xf32, #tpu.memory_space<vmem>>, vector<32x8xf32>
    %cst_67 = arith.constant dense<0.000000e+00> : vector<2x8xf32>
    %329 = tpu.matmul %327, %328, %cst_67 {dimension_numbers = #tpu.dot_dimension_numbers<[1], [0], [0], [1], [0, 0, 1, 1], [], []>} : vector<2x32xf32>, vector<32x8xf32>, vector<2x8xf32> -> vector<2x8xf32>
    %c0_68 = arith.constant 0 : index
    %c0_69 = arith.constant 0 : index
    %330 = vector.load %arg11[%c0_68, %c0_69] : memref<1x8xf32, #tpu.memory_space<vmem>>, vector<1x8xf32>
    %331 = vector.broadcast %330 : vector<1x8xf32> to vector<2x8xf32>
    %332 = arith.addf %329, %331 : vector<2x8xf32>
    %cst_70 = arith.constant dense<0xFF800000> : vector<2xf32>
    %333 = vector.multi_reduction <maximumf>, %332, %cst_70 [1] : vector<2x8xf32> to vector<2xf32>
    %334 = vector.shape_cast %333 : vector<2xf32> to vector<2x1xf32>
    %335 = vector.broadcast %334 : vector<2x1xf32> to vector<2x8xf32>
    %336 = arith.subf %332, %335 : vector<2x8xf32>
    %337 = math.exp %336 : vector<2x8xf32>
    %cst_71 = arith.constant dense<0.000000e+00> : vector<2xf32>
    %338 = vector.multi_reduction <add>, %337, %cst_71 [1] : vector<2x8xf32> to vector<2xf32>
    %339 = vector.shape_cast %338 : vector<2xf32> to vector<2x1xf32>
    %340 = vector.broadcast %339 : vector<2x1xf32> to vector<2x8xf32>
    %341 = arith.divf %337, %340 : vector<2x8xf32>
    %c0_72 = arith.constant 0 : index
    %c0_73 = arith.constant 0 : index
    %c0_74 = arith.constant 0 : index
    %342 = vector.load %arg12[%c0_72, %c0_73, %c0_74] : memref<1x2x8xf32, #tpu.memory_space<vmem>>, vector<1x2x8xf32>
    %343 = vector.shape_cast %342 : vector<1x2x8xf32> to vector<2x8xf32>
    %344 = vector.shape_cast %341 : vector<2x8xf32> to vector<1x2x8xf32>
    tpu.vector_store %arg12[%c0_72, %c0_73, %c0_74], %344 {strides = array<i32>} : memref<1x2x8xf32, #tpu.memory_space<vmem>>, vector<1x2x8xf32>,
    return
  }
  func.func @transform_0(%arg0: i32) -> (i32, i32, i32) {
    %c0_i32 = arith.constant 0 : i32
    %c0_i32_0 = arith.constant 0 : i32
    %c0_i32_1 = arith.constant 0 : i32
    return %arg0, %c0_i32, %c0_i32_0 : i32, i32, i32
  }
  func.func @transform_1(%arg0: i32) -> (i32, i32) {
    %c0_i32 = arith.constant 0 : i32
    %c0_i32_0 = arith.constant 0 : i32
    %c0_i32_1 = arith.constant 0 : i32
    return %c0_i32, %c0_i32_0 : i32, i32
  }
  func.func @transform_2(%arg0: i32) -> (i32, i32) {
    %c0_i32 = arith.constant 0 : i32
    %c0_i32_0 = arith.constant 0 : i32
    %c0_i32_1 = arith.constant 0 : i32
    return %c0_i32, %c0_i32_0 : i32, i32
  }
  func.func @transform_3(%arg0: i32) -> (i32, i32) {
    %c0_i32 = arith.constant 0 : i32
    %c0_i32_0 = arith.constant 0 : i32
    %c0_i32_1 = arith.constant 0 : i32
    return %c0_i32, %c0_i32_0 : i32, i32
  }
  func.func @transform_4(%arg0: i32) -> (i32, i32) {
    %c0_i32 = arith.constant 0 : i32
    %c0_i32_0 = arith.constant 0 : i32
    %c0_i32_1 = arith.constant 0 : i32
    return %c0_i32, %c0_i32_0 : i32, i32
  }
  func.func @transform_5(%arg0: i32) -> (i32, i32) {
    %c0_i32 = arith.constant 0 : i32
    %c0_i32_0 = arith.constant 0 : i32
    %c0_i32_1 = arith.constant 0 : i32
    return %c0_i32, %c0_i32_0 : i32, i32
  }
  func.func @transform_6(%arg0: i32) -> (i32, i32) {
    %c0_i32 = arith.constant 0 : i32
    %c0_i32_0 = arith.constant 0 : i32
    %c0_i32_1 = arith.constant 0 : i32
    return %c0_i32, %c0_i32_0 : i32, i32
  }
  func.func @transform_7(%arg0: i32) -> (i32, i32) {
    %c0_i32 = arith.constant 0 : i32
    %c0_i32_0 = arith.constant 0 : i32
    %c0_i32_1 = arith.constant 0 : i32
    return %c0_i32, %c0_i32_0 : i32, i32
  }
  func.func @transform_8(%arg0: i32) -> (i32, i32) {
    %c0_i32 = arith.constant 0 : i32
    %c0_i32_0 = arith.constant 0 : i32
    %c0_i32_1 = arith.constant 0 : i32
    return %c0_i32, %c0_i32_0 : i32, i32
  }
  func.func @transform_9(%arg0: i32) -> (i32, i32) {
    %c0_i32 = arith.constant 0 : i32
    %c0_i32_0 = arith.constant 0 : i32
    %c0_i32_1 = arith.constant 0 : i32
    return %c0_i32, %c0_i32_0 : i32, i32
  }
  func.func @transform_10(%arg0: i32) -> (i32, i32) {
    %c0_i32 = arith.constant 0 : i32
    %c0_i32_0 = arith.constant 0 : i32
    %c0_i32_1 = arith.constant 0 : i32
    return %c0_i32, %c0_i32_0 : i32, i32
  }
  func.func @transform_11(%arg0: i32) -> (i32, i32, i32) {
    %c0_i32 = arith.constant 0 : i32
    %c0_i32_0 = arith.constant 0 : i32
    %c0_i32_1 = arith.constant 0 : i32
    return %arg0, %c0_i32, %c0_i32_0 : i32, i32, i32
  }
}

</mosaic_0001>

<llo_original>
// kernel: tpu_custom_call.1
$region0: #{tpu_custom_call.1}
  #allocation0 [shape = 'u32[]', space=smem, size = 0x4, offset = 0x4, fixed_abs, tag = 'smem constant byte address 0x4 - core index']
  #allocation1 [shape = 'u32[72,128]{1,0:T(1,128)}', space=vmem, size = 0x9000, scoped, tag = 'internal scratch']
  %s0 = inlined_call_operand.hbm [shape: f32[1,16,16], index: 0, kind: input, shape index: {}]
  %s1 = inlined_call_operand.hbm [shape: f32[16,128], index: 1, kind: input, shape index: {}]
  %s2 = inlined_call_operand.vmem [shape: f32[32,128], index: 2, kind: input, shape index: {}]
  %s3 = inlined_call_operand.vmem [shape: f32[1,128], index: 3, kind: input, shape index: {}]
  %s4 = inlined_call_operand.hbm [shape: f32[32,128], index: 4, kind: input, shape index: {}]
  %s5 = inlined_call_operand.hbm [shape: f32[32,128], index: 5, kind: input, shape index: {}]
  %s6 = inlined_call_operand.vmem [shape: f32[1,128], index: 6, kind: input, shape index: {}]
  %s7 = inlined_call_operand.hbm [shape: f32[32,32], index: 7, kind: input, shape index: {}]
  %s8 = inlined_call_operand.vmem [shape: f32[1,32], index: 8, kind: input, shape index: {}]
  %s9 = inlined_call_operand.vmem [shape: f32[32,8], index: 9, kind: input, shape index: {}]
  %s10 = inlined_call_operand.vmem [shape: f32[1,8], index: 10, kind: input, shape index: {}]
  %s11 = inlined_call_operand.hbm [shape: f32[1,2,8], index: 11, kind: output, shape index: {}]
  %s12 = sld [smem:[#allocation0]]
  $region74: #{tpu_custom_call.1} parent=0
    _
  %s14 = ssub.s32 1, %s12
  %s15 = scalar_select 0, %s14, %s12
  $region1: #{tpu_custom_call.1} parent=0
    #allocation2 [shape = 'u8[8192]{0}', space=vmem, size = 0x2000, scoped, tag = 'input window, operand 0, single buffered']
    #allocation3 [shape = 's32[1]{0}', space=sflag, size = 0x4, scoped, tag = 'scoped memory for tpu_custom_call.1']
    #allocation4 [shape = 's32[1]{0}', space=sflag, size = 0x4, scoped, tag = 'scoped memory for tpu_custom_call.1']
    #allocation5 [shape = 'u8[8192]{0}', space=vmem, size = 0x2000, scoped, tag = 'input window, operand 1, single buffered']
    #allocation6 [shape = 's32[1]{0}', space=sflag, size = 0x4, scoped, tag = 'scoped memory for tpu_custom_call.1']
    #allocation7 [shape = 'u8[16384]{0}', space=vmem, size = 0x4000, scoped, tag = 'input window, operand 4, single buffered']
    #allocation8 [shape = 'u8[16384]{0}', space=vmem, size = 0x4000, scoped, tag = 'input window, operand 5, single buffered']
    #allocation9 [shape = 's32[1]{0}', space=sflag, size = 0x4, scoped, tag = 'scoped memory for tpu_custom_call.1']
    #allocation10 [shape = 'u8[16384]{0}', space=vmem, size = 0x4000, scoped, tag = 'input window, operand 7, single buffered']
    #allocation11 [shape = 'u8[1024]{0}', space=vmem, size = 0x400, scoped, tag = 'output window, operand 0, single buffered']
    %16 = vsyncpa [#allocation3], 0
    %17 = vsyncpa [#allocation6], 0
    %18 = vsyncpa [#allocation9], 0
    %19 = vsyncpa [#allocation4], 0
    // Predicated region
    $region2: #{tpu_custom_call.1} parent=1 // pred_check
      _
    $region3: #{tpu_custom_call.1} parent=1 // pred_check_branch
      %21 = sbr.rel (0) target = $region5
    $region4: #{tpu_custom_call.1} parent=1 // pred_region
      %23 = vsyncadd [#allocation3], 0
      %s24 = sshll.u32 %s0, 4
      %s25 = int_to_ptr.hbm [resolvable:$true] %s24
      %s26 = sshll.u32 [#allocation2], 4
      %s27 = int_to_ptr.vmem [resolvable:$true] %s26
      %32 = dma.hbm_to_vmem [thread:$0]  %s25, 256, %s27, [#allocation3], 128, 128, 8
    $region5: #{tpu_custom_call.1} parent=1 // pred_fallthru
      _
    // Predicated region
    $region6: #{tpu_custom_call.1} parent=1 // pred_check
      _
    $region7: #{tpu_custom_call.1} parent=1 // pred_check_branch
      %34 = sbr.rel (0) target = $region9
    $region8: #{tpu_custom_call.1} parent=1 // pred_region
      %36 = vsyncadd [#allocation6], 0
      %s37 = sshll.u32 %s1, 4
      %s38 = int_to_ptr.hbm [resolvable:$true] %s37
      %s39 = sshll.u32 [#allocation5], 4
      %s40 = int_to_ptr.vmem [resolvable:$true] %s39
      %45 = dma.hbm_to_vmem [thread:$0]  %s38, 256, %s40, [#allocation6], 128, 128, 8
    $region9: #{tpu_custom_call.1} parent=1 // pred_fallthru
      _
    // Predicated region
    $region10: #{tpu_custom_call.1} parent=1 // pred_check
      _
    $region11: #{tpu_custom_call.1} parent=1 // pred_check_branch
      %47 = sbr.rel (0) target = $region13
    $region12: #{tpu_custom_call.1} parent=1 // pred_region
      _
    $region13: #{tpu_custom_call.1} parent=1 // pred_fallthru
      _
    // Predicated region
    $region14: #{tpu_custom_call.1} parent=1 // pred_check
      _
    $region15: #{tpu_custom_call.1} parent=1 // pred_check_branch
      %49 = sbr.rel (0) target = $region17
    $region16: #{tpu_custom_call.1} parent=1 // pred_region
      _
    $region17: #{tpu_custom_call.1} parent=1 // pred_fallthru
      _
    // Predicated region
    $region18: #{tpu_custom_call.1} parent=1 // pred_check
      _
    $region19: #{tpu_custom_call.1} parent=1 // pred_check_branch
      %51 = sbr.rel (0) target = $region21
    $region20: #{tpu_custom_call.1} parent=1 // pred_region
      %53 = vsyncadd [#allocation6], 0
      %s54 = sshll.u32 %s4, 4
      %s55 = int_to_ptr.hbm [resolvable:$true] %s54
      %s56 = sshll.u32 [#allocation7], 4
      %s57 = int_to_ptr.vmem [resolvable:$true] %s56
      %62 = dma.hbm_to_vmem [thread:$0]  %s55, 512, %s57, [#allocation6], 128, 128, 8
    $region21: #{tpu_custom_call.1} parent=1 // pred_fallthru
      _
    // Predicated region
    $region22: #{tpu_custom_call.1} parent=1 // pred_check
      _
    $region23: #{tpu_custom_call.1} parent=1 // pred_check_branch
      %64 = sbr.rel (0) target = $region25
    $region24: #{tpu_custom_call.1} parent=1 // pred_region
      %66 = vsyncadd [#allocation9], 0
      %s67 = sshll.u32 %s5, 4
      %s68 = int_to_ptr.hbm [resolvable:$true] %s67
      %s69 = sshll.u32 [#allocation8], 4
      %s70 = int_to_ptr.vmem [resolvable:$true] %s69
      %75 = dma.hbm_to_vmem [thread:$0]  %s68, 512, %s70, [#allocation9], 128, 128, 8
    $region25: #{tpu_custom_call.1} parent=1 // pred_fallthru
      _
    // Predicated region
    $region26: #{tpu_custom_call.1} parent=1 // pred_check
      _
    $region27: #{tpu_custom_call.1} parent=1 // pred_check_branch
      %77 = sbr.rel (0) target = $region29
    $region28: #{tpu_custom_call.1} parent=1 // pred_region
      _
    $region29: #{tpu_custom_call.1} parent=1 // pred_fallthru
      _
    // Predicated region
    $region30: #{tpu_custom_call.1} parent=1 // pred_check
      _
    $region31: #{tpu_custom_call.1} parent=1 // pred_check_branch
      %79 = sbr.rel (0) target = $region33
    $region32: #{tpu_custom_call.1} parent=1 // pred_region
      %81 = vsyncadd [#allocation9], 0
      %s82 = sshll.u32 %s7, 4
      %s83 = int_to_ptr.hbm [resolvable:$true] %s82
      %s84 = sshll.u32 [#allocation10], 4
      %s85 = int_to_ptr.vmem [resolvable:$true] %s84
      %90 = dma.hbm_to_vmem [thread:$0]  %s83, 512, %s85, [#allocation9], 128, 128, 8
    $region33: #{tpu_custom_call.1} parent=1 // pred_fallthru
      _
    // Predicated region
    $region34: #{tpu_custom_call.1} parent=1 // pred_check
      _
    $region35: #{tpu_custom_call.1} parent=1 // pred_check_branch
      %92 = sbr.rel (0) target = $region37
    $region36: #{tpu_custom_call.1} parent=1 // pred_region
      _
    $region37: #{tpu_custom_call.1} parent=1 // pred_fallthru
      _
    // Predicated region
    $region38: #{tpu_custom_call.1} parent=1 // pred_check
      _
    $region39: #{tpu_custom_call.1} parent=1 // pred_check_branch
      %94 = sbr.rel (0) target = $region41
    $region40: #{tpu_custom_call.1} parent=1 // pred_region
      _
    $region41: #{tpu_custom_call.1} parent=1 // pred_fallthru
      _
    // Predicated region
    $region42: #{tpu_custom_call.1} parent=1 // pred_check
      _
    $region43: #{tpu_custom_call.1} parent=1 // pred_check_branch
      %96 = sbr.rel (0) target = $region45
    $region44: #{tpu_custom_call.1} parent=1 // pred_region
      _
    $region45: #{tpu_custom_call.1} parent=1 // pred_fallthru
      _
    // Predicated region
    $region46: #{tpu_custom_call.1} parent=1 // pred_check
      _
    $region47: #{tpu_custom_call.1} parent=1 // pred_check_branch
      %98 = sbr.rel (0) target = $region49
    $region48: #{tpu_custom_call.1} parent=1 // pred_region
      %100 = dma.done [#allocation3], 256
    $region49: #{tpu_custom_call.1} parent=1 // pred_fallthru
      _
    // Predicated region
    $region50: #{tpu_custom_call.1} parent=1 // pred_check
      _
    $region51: #{tpu_custom_call.1} parent=1 // pred_check_branch
      %102 = sbr.rel (0) target = $region53
    $region52: #{tpu_custom_call.1} parent=1 // pred_region
      %104 = dma.done [#allocation6], 256
    $region53: #{tpu_custom_call.1} parent=1 // pred_fallthru
      _
    // Predicated region
    $region54: #{tpu_custom_call.1} parent=1 // pred_check
      _
    $region55: #{tpu_custom_call.1} parent=1 // pred_check_branch
      %106 = sbr.rel (0) target = $region57
    $region56: #{tpu_custom_call.1} parent=1 // pred_region
      %108 = dma.done [#allocation6], 512
    $region57: #{tpu_custom_call.1} parent=1 // pred_fallthru
      _
    // Predicated region
    $region58: #{tpu_custom_call.1} parent=1 // pred_check
      _
    $region59: #{tpu_custom_call.1} parent=1 // pred_check_branch
      %110 = sbr.rel (0) target = $region61
    $region60: #{tpu_custom_call.1} parent=1 // pred_region
      %112 = dma.done [#allocation9], 512
    $region61: #{tpu_custom_call.1} parent=1 // pred_fallthru
      _
    // Predicated region
    $region62: #{tpu_custom_call.1} parent=1 // pred_check
      _
    $region63: #{tpu_custom_call.1} parent=1 // pred_check_branch
      %114 = sbr.rel (0) target = $region65
    $region64: #{tpu_custom_call.1} parent=1 // pred_region
      %116 = dma.done [#allocation9], 512
    $region65: #{tpu_custom_call.1} parent=1 // pred_fallthru
      _
    %v117 = vld [vmem:[#allocation5] sm:$0xff]
    %v118 = vld [vmem:[#allocation5 + $0x8] sm:$0xff]
    %v119 = vld [vmem:[#allocation7] sm:$0xff]
    %v120 = vld [vmem:[#allocation7 + $0x8] sm:$0xff]
    %v121 = vld [vmem:[#allocation7 + $0x10] sm:$0xff]
    %v122 = vld [vmem:[#allocation7 + $0x18] sm:$0xff]
    %v123 = vld [vmem:[%s2] sm:$0xff]
    %v124 = vld [vmem:[%s2 + $0x8] sm:$0xff]
    %v125 = vld [vmem:[%s2 + $0x10] sm:$0xff]
    %v126 = vld [vmem:[%s2 + $0x18] sm:$0xff]
    %v127 = vld [vmem:[#allocation8] sm:$0xff]
    %v128 = vld [vmem:[#allocation8 + $0x8] sm:$0xff]
    %v129 = vld [vmem:[#allocation8 + $0x10] sm:$0xff]
    %v130 = vld [vmem:[#allocation8 + $0x18] sm:$0xff]
    %v131 = vld [vmem:[%s3] sm:$0x1]
    %v132 = vld [vmem:[%s6] sm:$0x1]
    %v133 = vld [vmem:[#allocation2] sm:$0xff]
    %v134 = vld [vmem:[#allocation2 + $0x8] sm:$0xff]
    %v136 = vperm.slane %v131, 0
    %vm138 = vcmask 130048
    %v140 = vsel %vm138, %v133, 0
    %v143 = vsel %vm138, %v134, 0
    %145 = vmatpush.msra.mxu0 0.0
    %146 = vmatpush.msra.mxu0 0.0
    %147 = vmatpush.msra.mxu0 0.0
    %148 = vmatpush.msra.mxu0 0.0
    %149 = vmatpush.msra.mxu0 0.0
    %150 = vmatpush.msra.mxu0 0.0
    %151 = vmatpush.msra.mxu0 0.0
    %152 = vmatpush.msra.mxu0 0.0
    %153 = vmatpush.msra.mxu0 0.0
    %154 = vmatpush.msra.mxu0 0.0
    %155 = vmatpush.msra.mxu0 0.0
    %156 = vmatpush.msra.mxu0 0.0
    %157 = vmatpush.msra.mxu0 0.0
    %158 = vmatpush.msra.mxu0 0.0
    %159 = vmatpush.msra.mxu0 %v118
    %160 = vmatpush.msra.mxu0 %v117
    %161 = vmatmul.f32.gmra.mxu0 %v140
    %v162 = vpop.f32.mrf.mxu0
    %v163 = vadd.f32 %v136, %v162
    %164 = vmatmul.f32.gmra.mxu0 %v143
    %v165 = vpop.f32.mrf.mxu0
    %v166 = vadd.f32 %v136, %v165
    %167 = vdwg.mxu0
    %vm168 = vcmask 261120
    %v170 = vsel %vm168, 0.0, 0
    %172 = vmatpush.msra.mxu0 0.0
    %173 = vmatpush.msra.mxu0 0.0
    %174 = vmatpush.msra.mxu0 0.0
    %175 = vmatpush.msra.mxu0 0.0
    %176 = vmatpush.msra.mxu0 0.0
    %177 = vmatpush.msra.mxu0 0.0
    %178 = vmatpush.msra.mxu0 0.0
    %179 = vmatpush.msra.mxu0 0.0
    %180 = vmatpush.msra.mxu0 0.0
    %181 = vmatpush.msra.mxu0 0.0
    %182 = vmatpush.msra.mxu0 0.0
    %183 = vmatpush.msra.mxu0 0.0
    %184 = vmatpush.msra.mxu0 %v126
    %185 = vmatpush.msra.mxu0 %v125
    %186 = vmatpush.msra.mxu0 %v124
    %187 = vmatpush.msra.mxu0 %v123
    %188 = vmatmul.f32.gmra.mxu0 %v170
    %v189 = vpop.f32.mrf.mxu0
    %v190 = vadd.f32 0.0, %v189
    %191 = vdwg.mxu0
    %v192 = vadd.f32 %v163, %v190
    %v193 = vxor.u32 %v192, 2147483648
    %v194 = vmul.f32 %v193, 1.442695
    %v195 = vpow.pop %v194
    %v196 = vadd.f32 %v195, 1.0
    %v197 = vrcp.pop %v196
    %v198 = vmul.f32 %v196, %v197
    %v199 = vsub.f32 1.0, %v198
    %v200 = vmul.f32 %v197, %v199
    %v201 = vadd.f32 %v197, %v200
    %vm202 = vweird.f32 %v196
    %vm203 = vweird.f32 %v197
    %vm204 = vmor %vm202, %vm203
    %v205 = vsel %vm204, %v197, %v201
    %v206 = vand.u32 2147483647, %v196
    %vm207 = vcmp.eq.f32.partialorder %v206, 8.507059e+37
    %v208 = vand.u32 %v196, 2147483648
    %v209 = vor.u32 1.1754944e-38, %v208
    %v210 = vsel %vm207, %v209, %v205
    %v211 = vmul.f32 1.0, %v210
    %v212 = vtanh.pop %v192
    %v213 = vmul.f32 %v211, 0.0
    %215 = vrot.lane.b32.xlu0 %v212, 64
    %v216 = vpop.permute.xlu0 %215
    %v218 = vmul.f32 %v211, %v216
    %220 = vrot.lane.b32.xlu0 %v218, 32
    %v221 = vpop.permute.xlu0 %220
    %v223 = vadd.f32 %v213, %v221
    %v224 = vtanh.pop %v223
    %226 = vrot.lane.b32.xlu0 %v224, 64
    %v227 = vpop.permute.xlu0 %226
    %v229 = vmul.f32 %v211, %v227
    %231 = vrot.lane.b32.xlu0 %v229, 32
    %v232 = vpop.permute.xlu0 %231
    %v233 = vsel %vm168, %v232, 0
    %235 = vmatpush.msra.mxu0 0.0
    %236 = vmatpush.msra.mxu0 0.0
    %237 = vmatpush.msra.mxu0 0.0
    %238 = vmatpush.msra.mxu0 0.0
    %239 = vmatpush.msra.mxu0 0.0
    %240 = vmatpush.msra.mxu0 0.0
    %241 = vmatpush.msra.mxu0 0.0
    %242 = vmatpush.msra.mxu0 0.0
    %243 = vmatpush.msra.mxu0 0.0
    %244 = vmatpush.msra.mxu0 0.0
    %245 = vmatpush.msra.mxu0 0.0
    %246 = vmatpush.msra.mxu0 0.0
    %247 = vmatpush.msra.mxu0 %v126
    %248 = vmatpush.msra.mxu0 %v125
    %249 = vmatpush.msra.mxu0 %v124
    %250 = vmatpush.msra.mxu0 %v123
    %251 = vmatmul.f32.gmra.mxu0 %v233
    %v252 = vpop.f32.mrf.mxu0
    %v253 = vadd.f32 0.0, %v252
    %254 = vdwg.mxu0
    %v256 = vrot.slane %v253, 6
    %v258 = vadd.f32 %v163, %v256
    %v259 = vxor.u32 %v258, 2147483648
    %v260 = vmul.f32 %v259, 1.442695
    %v261 = vpow.pop %v260
    %v262 = vadd.f32 %v261, 1.0
    %v263 = vrcp.pop %v262
    %v264 = vmul.f32 %v262, %v263
    %v265 = vsub.f32 1.0, %v264
    %v266 = vmul.f32 %v263, %v265
    %v267 = vadd.f32 %v263, %v266
    %vm268 = vweird.f32 %v262
    %vm269 = vweird.f32 %v263
    %vm270 = vmor %vm268, %vm269
    %v271 = vsel %vm270, %v263, %v267
    %v272 = vand.u32 2147483647, %v262
    %vm273 = vcmp.eq.f32.partialorder %v272, 8.507059e+37
    %v274 = vand.u32 %v262, 2147483648
    %v275 = vor.u32 1.1754944e-38, %v274
    %v276 = vsel %vm273, %v275, %v271
    %v277 = vmul.f32 1.0, %v276
    %v278 = vtanh.pop %v258
    %v280 = vrot.slane %v223, 6
    %v282 = vmul.f32 %v277, %v280
    %284 = vrot.lane.b32.xlu0 %v278, 64
    %v285 = vpop.permute.xlu0 %284
    %v287 = vmul.f32 %v277, %v285
    %289 = vrot.lane.b32.xlu0 %v287, 32
    %v290 = vpop.permute.xlu0 %289
    %v292 = vadd.f32 %v282, %v290
    %v293 = vtanh.pop %v292
    %295 = vrot.lane.b32.xlu0 %v293, 64
    %v296 = vpop.permute.xlu0 %295
    %v298 = vmul.f32 %v277, %v296
    %v300 = vperm.slane %v132, 0
    %302 = vmatpush.msra.mxu0 0.0
    %303 = vmatpush.msra.mxu0 0.0
    %304 = vmatpush.msra.mxu0 0.0
    %305 = vmatpush.msra.mxu0 0.0
    %306 = vmatpush.msra.mxu0 0.0
    %307 = vmatpush.msra.mxu0 0.0
    %308 = vmatpush.msra.mxu0 0.0
    %309 = vmatpush.msra.mxu0 0.0
    %310 = vmatpush.msra.mxu0 0.0
    %311 = vmatpush.msra.mxu0 0.0
    %312 = vmatpush.msra.mxu0 0.0
    %313 = vmatpush.msra.mxu0 0.0
    %314 = vmatpush.msra.mxu0 %v122
    %315 = vmatpush.msra.mxu0 %v121
    %316 = vmatpush.msra.mxu0 %v120
    %317 = vmatpush.msra.mxu0 %v119
    %318 = vmatmul.f32.gmra.mxu0 %v233
    %v319 = vpop.f32.mrf.mxu0
    %v320 = vadd.f32 %v300, %v319
    %321 = vdwg.mxu0
    %322 = vmatpush.msra.mxu0 0.0
    %323 = vmatpush.msra.mxu0 0.0
    %324 = vmatpush.msra.mxu0 0.0
    %325 = vmatpush.msra.mxu0 0.0
    %326 = vmatpush.msra.mxu0 0.0
    %327 = vmatpush.msra.mxu0 0.0
    %328 = vmatpush.msra.mxu0 0.0
    %329 = vmatpush.msra.mxu0 0.0
    %330 = vmatpush.msra.mxu0 0.0
    %331 = vmatpush.msra.mxu0 0.0
    %332 = vmatpush.msra.mxu0 0.0
    %333 = vmatpush.msra.mxu0 0.0
    %334 = vmatpush.msra.mxu0 %v130
    %335 = vmatpush.msra.mxu0 %v129
    %336 = vmatpush.msra.mxu0 %v128
    %337 = vmatpush.msra.mxu0 %v127
    %338 = vmatmul.f32.gmra.mxu0 %v170
    %v339 = vpop.f32.mrf.mxu0
    %v340 = vadd.f32 0.0, %v339
    %341 = vdwg.mxu0
    %v342 = vadd.f32 %v320, %v340
    %v343 = vxor.u32 %v342, 2147483648
    %v344 = vmul.f32 %v343, 1.442695
    %v345 = vpow.pop %v344
    %v346 = vadd.f32 %v345, 1.0
    %v347 = vrcp.pop %v346
    %v348 = vmul.f32 %v346, %v347
    %v349 = vsub.f32 1.0, %v348
    %v350 = vmul.f32 %v347, %v349
    %v351 = vadd.f32 %v347, %v350
    %vm352 = vweird.f32 %v346
    %vm353 = vweird.f32 %v347
    %vm354 = vmor %vm352, %vm353
    %v355 = vsel %vm354, %v347, %v351
    %v356 = vand.u32 2147483647, %v346
    %vm357 = vcmp.eq.f32.partialorder %v356, 8.507059e+37
    %v358 = vand.u32 %v346, 2147483648
    %v359 = vor.u32 1.1754944e-38, %v358
    %v360 = vsel %vm357, %v359, %v355
    %v361 = vmul.f32 1.0, %v360
    %v362 = vtanh.pop %v342
    %v363 = vmul.f32 %v361, 0.0
    %365 = vrot.lane.b32.xlu0 %v362, 64
    %v366 = vpop.permute.xlu0 %365
    %v368 = vmul.f32 %v361, %v366
    %370 = vrot.lane.b32.xlu0 %v368, 32
    %v371 = vpop.permute.xlu0 %370
    %v373 = vadd.f32 %v363, %v371
    %v374 = vtanh.pop %v373
    %376 = vrot.lane.b32.xlu0 %v374, 64
    %v377 = vpop.permute.xlu0 %376
    %v379 = vmul.f32 %v361, %v377
    %v381 = vrot.slane %v298, 2
    %382 = vrot.lane.b32.xlu0 %v381, 32
    %v383 = vpop.permute.xlu0 %382
    %v384 = vsel %vm168, %v383, 0
    %386 = vmatpush.msra.mxu0 0.0
    %387 = vmatpush.msra.mxu0 0.0
    %388 = vmatpush.msra.mxu0 0.0
    %389 = vmatpush.msra.mxu0 0.0
    %390 = vmatpush.msra.mxu0 0.0
    %391 = vmatpush.msra.mxu0 0.0
    %392 = vmatpush.msra.mxu0 0.0
    %393 = vmatpush.msra.mxu0 0.0
    %394 = vmatpush.msra.mxu0 0.0
    %395 = vmatpush.msra.mxu0 0.0
    %396 = vmatpush.msra.mxu0 0.0
    %397 = vmatpush.msra.mxu0 0.0
    %398 = vmatpush.msra.mxu0 %v126
    %399 = vmatpush.msra.mxu0 %v125
    %400 = vmatpush.msra.mxu0 %v124
    %401 = vmatpush.msra.mxu0 %v123
    %402 = vmatmul.f32.gmra.mxu0 %v384
    %v403 = vpop.f32.mrf.mxu0
    %v404 = vadd.f32 0.0, %v403
    %405 = vdwg.mxu0
    %v407 = vrot.slane %v404, 4
    %v409 = vadd.f32 %v163, %v407
    %v410 = vxor.u32 %v409, 2147483648
    %v411 = vmul.f32 %v410, 1.442695
    %v412 = vpow.pop %v411
    %v413 = vadd.f32 %v412, 1.0
    %v414 = vrcp.pop %v413
    %v415 = vmul.f32 %v413, %v414
    %v416 = vsub.f32 1.0, %v415
    %v417 = vmul.f32 %v414, %v416
    %v418 = vadd.f32 %v414, %v417
    %vm419 = vweird.f32 %v413
    %vm420 = vweird.f32 %v414
    %vm421 = vmor %vm419, %vm420
    %v422 = vsel %vm421, %v414, %v418
    %v423 = vand.u32 2147483647, %v413
    %vm424 = vcmp.eq.f32.partialorder %v423, 8.507059e+37
    %v425 = vand.u32 %v413, 2147483648
    %v426 = vor.u32 1.1754944e-38, %v425
    %v427 = vsel %vm424, %v426, %v422
    %v428 = vmul.f32 1.0, %v427
    %v429 = vtanh.pop %v409
    %v431 = vrot.slane %v292, 6
    %v433 = vmul.f32 %v428, %v431
    %435 = vrot.lane.b32.xlu0 %v429, 64
    %v436 = vpop.permute.xlu0 %435
    %v438 = vmul.f32 %v428, %v436
    %440 = vrot.lane.b32.xlu0 %v438, 32
    %v441 = vpop.permute.xlu0 %440
    %v443 = vadd.f32 %v433, %v441
    %v444 = vtanh.pop %v443
    %446 = vrot.lane.b32.xlu0 %v444, 64
    %v447 = vpop.permute.xlu0 %446
    %v449 = vmul.f32 %v428, %v447
    %450 = vmatpush.msra.mxu0 0.0
    %451 = vmatpush.msra.mxu0 0.0
    %452 = vmatpush.msra.mxu0 0.0
    %453 = vmatpush.msra.mxu0 0.0
    %454 = vmatpush.msra.mxu0 0.0
    %455 = vmatpush.msra.mxu0 0.0
    %456 = vmatpush.msra.mxu0 0.0
    %457 = vmatpush.msra.mxu0 0.0
    %458 = vmatpush.msra.mxu0 0.0
    %459 = vmatpush.msra.mxu0 0.0
    %460 = vmatpush.msra.mxu0 0.0
    %461 = vmatpush.msra.mxu0 0.0
    %462 = vmatpush.msra.mxu0 %v122
    %463 = vmatpush.msra.mxu0 %v121
    %464 = vmatpush.msra.mxu0 %v120
    %465 = vmatpush.msra.mxu0 %v119
    %466 = vmatmul.f32.gmra.mxu0 %v384
    %v467 = vpop.f32.mrf.mxu0
    %v468 = vadd.f32 %v300, %v467
    %469 = vdwg.mxu0
    %471 = vrot.lane.b32.xlu0 %v379, 32
    %v472 = vpop.permute.xlu0 %471
    %v473 = vsel %vm168, %v472, 0
    %475 = vmatpush.msra.mxu0 0.0
    %476 = vmatpush.msra.mxu0 0.0
    %477 = vmatpush.msra.mxu0 0.0
    %478 = vmatpush.msra.mxu0 0.0
    %479 = vmatpush.msra.mxu0 0.0
    %480 = vmatpush.msra.mxu0 0.0
    %481 = vmatpush.msra.mxu0 0.0
    %482 = vmatpush.msra.mxu0 0.0
    %483 = vmatpush.msra.mxu0 0.0
    %484 = vmatpush.msra.mxu0 0.0
    %485 = vmatpush.msra.mxu0 0.0
    %486 = vmatpush.msra.mxu0 0.0
    %487 = vmatpush.msra.mxu0 %v130
    %488 = vmatpush.msra.mxu0 %v129
    %489 = vmatpush.msra.mxu0 %v128
    %490 = vmatpush.msra.mxu0 %v127
    %491 = vmatmul.f32.gmra.mxu0 %v473
    %v492 = vpop.f32.mrf.mxu0
    %v493 = vadd.f32 0.0, %v492
    %494 = vdwg.mxu0
    %v495 = vadd.f32 %v468, %v493
    %v496 = vxor.u32 %v495, 2147483648
    %v497 = vmul.f32 %v496, 1.442695
    %v498 = vpow.pop %v497
    %v499 = vadd.f32 %v498, 1.0
    %v500 = vrcp.pop %v499
    %v501 = vmul.f32 %v499, %v500
    %v502 = vsub.f32 1.0, %v501
    %v503 = vmul.f32 %v500, %v502
    %v504 = vadd.f32 %v500, %v503
    %vm505 = vweird.f32 %v499
    %vm506 = vweird.f32 %v500
    %vm507 = vmor %vm505, %vm506
    %v508 = vsel %vm507, %v500, %v504
    %v509 = vand.u32 2147483647, %v499
    %vm510 = vcmp.eq.f32.partialorder %v509, 8.507059e+37
    %v511 = vand.u32 %v499, 2147483648
    %v512 = vor.u32 1.1754944e-38, %v511
    %v513 = vsel %vm510, %v512, %v508
    %v514 = vmul.f32 1.0, %v513
    %v515 = vtanh.pop %v495
    %v516 = vmul.f32 %v514, %v373
    %518 = vrot.lane.b32.xlu0 %v515, 64
    %v519 = vpop.permute.xlu0 %518
    %v521 = vmul.f32 %v514, %v519
    %523 = vrot.lane.b32.xlu0 %v521, 32
    %v524 = vpop.permute.xlu0 %523
    %v526 = vadd.f32 %v516, %v524
    %v527 = vtanh.pop %v526
    %529 = vrot.lane.b32.xlu0 %v527, 64
    %v530 = vpop.permute.xlu0 %529
    %v532 = vmul.f32 %v514, %v530
    %v534 = vrot.slane %v449, 4
    %535 = vrot.lane.b32.xlu0 %v534, 32
    %v536 = vpop.permute.xlu0 %535
    %v537 = vsel %vm168, %v536, 0
    %539 = vmatpush.msra.mxu0 0.0
    %540 = vmatpush.msra.mxu0 0.0
    %541 = vmatpush.msra.mxu0 0.0
    %542 = vmatpush.msra.mxu0 0.0
    %543 = vmatpush.msra.mxu0 0.0
    %544 = vmatpush.msra.mxu0 0.0
    %545 = vmatpush.msra.mxu0 0.0
    %546 = vmatpush.msra.mxu0 0.0
    %547 = vmatpush.msra.mxu0 0.0
    %548 = vmatpush.msra.mxu0 0.0
    %549 = vmatpush.msra.mxu0 0.0
    %550 = vmatpush.msra.mxu0 0.0
    %551 = vmatpush.msra.mxu0 %v126
    %552 = vmatpush.msra.mxu0 %v125
    %553 = vmatpush.msra.mxu0 %v124
    %554 = vmatpush.msra.mxu0 %v123
    %555 = vmatmul.f32.gmra.mxu0 %v537
    %v556 = vpop.f32.mrf.mxu0
    %v557 = vadd.f32 0.0, %v556
    %558 = vdwg.mxu0
    %v560 = vrot.slane %v557, 2
    %v562 = vadd.f32 %v163, %v560
    %v563 = vxor.u32 %v562, 2147483648
    %v564 = vmul.f32 %v563, 1.442695
    %v565 = vpow.pop %v564
    %v566 = vadd.f32 %v565, 1.0
    %v567 = vrcp.pop %v566
    %v568 = vmul.f32 %v566, %v567
    %v569 = vsub.f32 1.0, %v568
    %v570 = vmul.f32 %v567, %v569
    %v571 = vadd.f32 %v567, %v570
    %vm572 = vweird.f32 %v566
    %vm573 = vweird.f32 %v567
    %vm574 = vmor %vm572, %vm573
    %v575 = vsel %vm574, %v567, %v571
    %v576 = vand.u32 2147483647, %v566
    %vm577 = vcmp.eq.f32.partialorder %v576, 8.507059e+37
    %v578 = vand.u32 %v566, 2147483648
    %v579 = vor.u32 1.1754944e-38, %v578
    %v580 = vsel %vm577, %v579, %v575
    %v581 = vmul.f32 1.0, %v580
    %v582 = vtanh.pop %v562
    %v584 = vrot.slane %v443, 6
    %v586 = vmul.f32 %v581, %v584
    %588 = vrot.lane.b32.xlu0 %v582, 64
    %v589 = vpop.permute.xlu0 %588
    %v591 = vmul.f32 %v581, %v589
    %593 = vrot.lane.b32.xlu0 %v591, 32
    %v594 = vpop.permute.xlu0 %593
    %v596 = vadd.f32 %v586, %v594
    %v597 = vtanh.pop %v596
    %599 = vrot.lane.b32.xlu0 %v597, 64
    %v600 = vpop.permute.xlu0 %599
    %v602 = vmul.f32 %v581, %v600
    %603 = vmatpush.msra.mxu0 0.0
    %604 = vmatpush.msra.mxu0 0.0
    %605 = vmatpush.msra.mxu0 0.0
    %606 = vmatpush.msra.mxu0 0.0
    %607 = vmatpush.msra.mxu0 0.0
    %608 = vmatpush.msra.mxu0 0.0
    %609 = vmatpush.msra.mxu0 0.0
    %610 = vmatpush.msra.mxu0 0.0
    %611 = vmatpush.msra.mxu0 0.0
    %612 = vmatpush.msra.mxu0 0.0
    %613 = vmatpush.msra.mxu0 0.0
    %614 = vmatpush.msra.mxu0 0.0
    %615 = vmatpush.msra.mxu0 %v122
    %616 = vmatpush.msra.mxu0 %v121
    %617 = vmatpush.msra.mxu0 %v120
    %618 = vmatpush.msra.mxu0 %v119
    %619 = vmatmul.f32.gmra.mxu0 %v537
    %v620 = vpop.f32.mrf.mxu0
    %v621 = vadd.f32 %v300, %v620
    %622 = vdwg.mxu0
    %624 = vrot.lane.b32.xlu0 %v532, 32
    %v625 = vpop.permute.xlu0 %624
    %v626 = vsel %vm168, %v625, 0
    %628 = vmatpush.msra.mxu0 0.0
    %629 = vmatpush.msra.mxu0 0.0
    %630 = vmatpush.msra.mxu0 0.0
    %631 = vmatpush.msra.mxu0 0.0
    %632 = vmatpush.msra.mxu0 0.0
    %633 = vmatpush.msra.mxu0 0.0
    %634 = vmatpush.msra.mxu0 0.0
    %635 = vmatpush.msra.mxu0 0.0
    %636 = vmatpush.msra.mxu0 0.0
    %637 = vmatpush.msra.mxu0 0.0
    %638 = vmatpush.msra.mxu0 0.0
    %639 = vmatpush.msra.mxu0 0.0
    %640 = vmatpush.msra.mxu0 %v130
    %641 = vmatpush.msra.mxu0 %v129
    %642 = vmatpush.msra.mxu0 %v128
    %643 = vmatpush.msra.mxu0 %v127
    %644 = vmatmul.f32.gmra.mxu0 %v626
    %v645 = vpop.f32.mrf.mxu0
    %v646 = vadd.f32 0.0, %v645
    %647 = vdwg.mxu0
    %v648 = vadd.f32 %v621, %v646
    %v649 = vxor.u32 %v648, 2147483648
    %v650 = vmul.f32 %v649, 1.442695
    %v651 = vpow.pop %v650
    %v652 = vadd.f32 %v651, 1.0
    %v653 = vrcp.pop %v652
    %v654 = vmul.f32 %v652, %v653
    %v655 = vsub.f32 1.0, %v654
    %v656 = vmul.f32 %v653, %v655
    %v657 = vadd.f32 %v653, %v656
    %vm658 = vweird.f32 %v652
    %vm659 = vweird.f32 %v653
    %vm660 = vmor %vm658, %vm659
    %v661 = vsel %vm660, %v653, %v657
    %v662 = vand.u32 2147483647, %v652
    %vm663 = vcmp.eq.f32.partialorder %v662, 8.507059e+37
    %v664 = vand.u32 %v652, 2147483648
    %v665 = vor.u32 1.1754944e-38, %v664
    %v666 = vsel %vm663, %v665, %v661
    %v667 = vmul.f32 1.0, %v666
    %v668 = vtanh.pop %v648
    %v669 = vmul.f32 %v667, %v526
    %671 = vrot.lane.b32.xlu0 %v668, 64
    %v672 = vpop.permute.xlu0 %671
    %v674 = vmul.f32 %v667, %v672
    %676 = vrot.lane.b32.xlu0 %v674, 32
    %v677 = vpop.permute.xlu0 %676
    %v679 = vadd.f32 %v669, %v677
    %v680 = vtanh.pop %v679
    %682 = vrot.lane.b32.xlu0 %v680, 64
    %v683 = vpop.permute.xlu0 %682
    %v685 = vmul.f32 %v667, %v683
    %v687 = vrot.slane %v602, 6
    %688 = vrot.lane.b32.xlu0 %v687, 32
    %v689 = vpop.permute.xlu0 %688
    %v690 = vsel %vm168, %v689, 0
    %692 = vmatpush.msra.mxu0 0.0
    %693 = vmatpush.msra.mxu0 0.0
    %694 = vmatpush.msra.mxu0 0.0
    %695 = vmatpush.msra.mxu0 0.0
    %696 = vmatpush.msra.mxu0 0.0
    %697 = vmatpush.msra.mxu0 0.0
    %698 = vmatpush.msra.mxu0 0.0
    %699 = vmatpush.msra.mxu0 0.0
    %700 = vmatpush.msra.mxu0 0.0
    %701 = vmatpush.msra.mxu0 0.0
    %702 = vmatpush.msra.mxu0 0.0
    %703 = vmatpush.msra.mxu0 0.0
    %704 = vmatpush.msra.mxu0 %v126
    %705 = vmatpush.msra.mxu0 %v125
    %706 = vmatpush.msra.mxu0 %v124
    %707 = vmatpush.msra.mxu0 %v123
    %708 = vmatmul.f32.gmra.mxu0 %v690
    %v709 = vpop.f32.mrf.mxu0
    %v710 = vadd.f32 0.0, %v709
    %711 = vdwg.mxu0
    %v712 = vadd.f32 %v166, %v710
    %v713 = vxor.u32 %v712, 2147483648
    %v714 = vmul.f32 %v713, 1.442695
    %v715 = vpow.pop %v714
    %v716 = vadd.f32 %v715, 1.0
    %v717 = vrcp.pop %v716
    %v718 = vmul.f32 %v716, %v717
    %v719 = vsub.f32 1.0, %v718
    %v720 = vmul.f32 %v717, %v719
    %v721 = vadd.f32 %v717, %v720
    %vm722 = vweird.f32 %v716
    %vm723 = vweird.f32 %v717
    %vm724 = vmor %vm722, %vm723
    %v725 = vsel %vm724, %v717, %v721
    %v726 = vand.u32 2147483647, %v716
    %vm727 = vcmp.eq.f32.partialorder %v726, 8.507059e+37
    %v728 = vand.u32 %v716, 2147483648
    %v729 = vor.u32 1.1754944e-38, %v728
    %v730 = vsel %vm727, %v729, %v725
    %v731 = vmul.f32 1.0, %v730
    %v732 = vtanh.pop %v712
    %v734 = vrot.slane %v596, 6
    %v736 = vmul.f32 %v731, %v734
    %738 = vrot.lane.b32.xlu0 %v732, 64
    %v739 = vpop.permute.xlu0 %738
    %v741 = vmul.f32 %v731, %v739
    %743 = vrot.lane.b32.xlu0 %v741, 32
    %v744 = vpop.permute.xlu0 %743
    %v746 = vadd.f32 %v736, %v744
    %v747 = vtanh.pop %v746
    %749 = vrot.lane.b32.xlu0 %v747, 64
    %v750 = vpop.permute.xlu0 %749
    %v752 = vmul.f32 %v731, %v750
    %753 = vmatpush.msra.mxu0 0.0
    %754 = vmatpush.msra.mxu0 0.0
    %755 = vmatpush.msra.mxu0 0.0
    %756 = vmatpush.msra.mxu0 0.0
    %757 = vmatpush.msra.mxu0 0.0
    %758 = vmatpush.msra.mxu0 0.0
    %759 = vmatpush.msra.mxu0 0.0
    %760 = vmatpush.msra.mxu0 0.0
    %761 = vmatpush.msra.mxu0 0.0
    %762 = vmatpush.msra.mxu0 0.0
    %763 = vmatpush.msra.mxu0 0.0
    %764 = vmatpush.msra.mxu0 0.0
    %765 = vmatpush.msra.mxu0 %v122
    %766 = vmatpush.msra.mxu0 %v121
    %767 = vmatpush.msra.mxu0 %v120
    %768 = vmatpush.msra.mxu0 %v119
    %769 = vmatmul.f32.gmra.mxu0 %v690
    %v770 = vpop.f32.mrf.mxu0
    %v771 = vadd.f32 %v300, %v770
    %772 = vdwg.mxu0
    %774 = vrot.lane.b32.xlu0 %v685, 32
    %v775 = vpop.permute.xlu0 %774
    %v776 = vsel %vm168, %v775, 0
    %778 = vmatpush.msra.mxu0 0.0
    %779 = vmatpush.msra.mxu0 0.0
    %780 = vmatpush.msra.mxu0 0.0
    %781 = vmatpush.msra.mxu0 0.0
    %782 = vmatpush.msra.mxu0 0.0
    %783 = vmatpush.msra.mxu0 0.0
    %784 = vmatpush.msra.mxu0 0.0
    %785 = vmatpush.msra.mxu0 0.0
    %786 = vmatpush.msra.mxu0 0.0
    %787 = vmatpush.msra.mxu0 0.0
    %788 = vmatpush.msra.mxu0 0.0
    %789 = vmatpush.msra.mxu0 0.0
    %790 = vmatpush.msra.mxu0 %v130
    %791 = vmatpush.msra.mxu0 %v129
    %792 = vmatpush.msra.mxu0 %v128
    %793 = vmatpush.msra.mxu0 %v127
    %794 = vmatmul.f32.gmra.mxu0 %v776
    %v795 = vpop.f32.mrf.mxu0
    %v796 = vadd.f32 0.0, %v795
    %797 = vdwg.mxu0
    %v798 = vadd.f32 %v771, %v796
    %v799 = vxor.u32 %v798, 2147483648
    %v800 = vmul.f32 %v799, 1.442695
    %v801 = vpow.pop %v800
    %v802 = vadd.f32 %v801, 1.0
    %v803 = vrcp.pop %v802
    %v804 = vmul.f32 %v802, %v803
    %v805 = vsub.f32 1.0, %v804
    %v806 = vmul.f32 %v803, %v805
    %v807 = vadd.f32 %v803, %v806
    %vm808 = vweird.f32 %v802
    %vm809 = vweird.f32 %v803
    %vm810 = vmor %vm808, %vm809
    %v811 = vsel %vm810, %v803, %v807
    %v812 = vand.u32 2147483647, %v802
    %vm813 = vcmp.eq.f32.partialorder %v812, 8.507059e+37
    %v814 = vand.u32 %v802, 2147483648
    %v815 = vor.u32 1.1754944e-38, %v814
    %v816 = vsel %vm813, %v815, %v811
    %v817 = vmul.f32 1.0, %v816
    %v818 = vtanh.pop %v798
    %v819 = vmul.f32 %v817, %v679
    %821 = vrot.lane.b32.xlu0 %v818, 64
    %v822 = vpop.permute.xlu0 %821
    %v824 = vmul.f32 %v817, %v822
    %826 = vrot.lane.b32.xlu0 %v824, 32
    %v827 = vpop.permute.xlu0 %826
    %v829 = vadd.f32 %v819, %v827
    %v830 = vtanh.pop %v829
    %832 = vrot.lane.b32.xlu0 %v830, 64
    %v833 = vpop.permute.xlu0 %832
    %v835 = vmul.f32 %v817, %v833
    %837 = vrot.lane.b32.xlu0 %v752, 32
    %v838 = vpop.permute.xlu0 %837
    %v839 = vsel %vm168, %v838, 0
    %841 = vmatpush.msra.mxu0 0.0
    %842 = vmatpush.msra.mxu0 0.0
    %843 = vmatpush.msra.mxu0 0.0
    %844 = vmatpush.msra.mxu0 0.0
    %845 = vmatpush.msra.mxu0 0.0
    %846 = vmatpush.msra.mxu0 0.0
    %847 = vmatpush.msra.mxu0 0.0
    %848 = vmatpush.msra.mxu0 0.0
    %849 = vmatpush.msra.mxu0 0.0
    %850 = vmatpush.msra.mxu0 0.0
    %851 = vmatpush.msra.mxu0 0.0
    %852 = vmatpush.msra.mxu0 0.0
    %853 = vmatpush.msra.mxu0 %v126
    %854 = vmatpush.msra.mxu0 %v125
    %855 = vmatpush.msra.mxu0 %v124
    %856 = vmatpush.msra.mxu0 %v123
    %857 = vmatmul.f32.gmra.mxu0 %v839
    %v858 = vpop.f32.mrf.mxu0
    %v859 = vadd.f32 0.0, %v858
    %860 = vdwg.mxu0
    %v862 = vrot.slane %v859, 6
    %v864 = vadd.f32 %v166, %v862
    %v865 = vxor.u32 %v864, 2147483648
    %v866 = vmul.f32 %v865, 1.442695
    %v867 = vpow.pop %v866
    %v868 = vadd.f32 %v867, 1.0
    %v869 = vrcp.pop %v868
    %v870 = vmul.f32 %v868, %v869
    %v871 = vsub.f32 1.0, %v870
    %v872 = vmul.f32 %v869, %v871
    %v873 = vadd.f32 %v869, %v872
    %vm874 = vweird.f32 %v868
    %vm875 = vweird.f32 %v869
    %vm876 = vmor %vm874, %vm875
    %v877 = vsel %vm876, %v869, %v873
    %v878 = vand.u32 2147483647, %v868
    %vm879 = vcmp.eq.f32.partialorder %v878, 8.507059e+37
    %v880 = vand.u32 %v868, 2147483648
    %v881 = vor.u32 1.1754944e-38, %v880
    %v882 = vsel %vm879, %v881, %v877
    %v883 = vmul.f32 1.0, %v882
    %v884 = vtanh.pop %v864
    %v886 = vrot.slane %v746, 6
    %v888 = vmul.f32 %v883, %v886
    %890 = vrot.lane.b32.xlu0 %v884, 64
    %v891 = vpop.permute.xlu0 %890
    %v893 = vmul.f32 %v883, %v891
    %895 = vrot.lane.b32.xlu0 %v893, 32
    %v896 = vpop.permute.xlu0 %895
    %v898 = vadd.f32 %v888, %v896
    %v899 = vtanh.pop %v898
    %901 = vrot.lane.b32.xlu0 %v899, 64
    %v902 = vpop.permute.xlu0 %901
    %v904 = vmul.f32 %v883, %v902
    %905 = vmatpush.msra.mxu0 0.0
    %906 = vmatpush.msra.mxu0 0.0
    %907 = vmatpush.msra.mxu0 0.0
    %908 = vmatpush.msra.mxu0 0.0
    %909 = vmatpush.msra.mxu0 0.0
    %910 = vmatpush.msra.mxu0 0.0
    %911 = vmatpush.msra.mxu0 0.0
    %912 = vmatpush.msra.mxu0 0.0
    %913 = vmatpush.msra.mxu0 0.0
    %914 = vmatpush.msra.mxu0 0.0
    %915 = vmatpush.msra.mxu0 0.0
    %916 = vmatpush.msra.mxu0 0.0
    %917 = vmatpush.msra.mxu0 %v122
    %918 = vmatpush.msra.mxu0 %v121
    %919 = vmatpush.msra.mxu0 %v120
    %920 = vmatpush.msra.mxu0 %v119
    %921 = vmatmul.f32.gmra.mxu0 %v839
    %v922 = vpop.f32.mrf.mxu0
    %v923 = vadd.f32 %v300, %v922
    %924 = vdwg.mxu0
    %926 = vrot.lane.b32.xlu0 %v835, 32
    %v927 = vpop.permute.xlu0 %926
    %v928 = vsel %vm168, %v927, 0
    %930 = vmatpush.msra.mxu0 0.0
    %931 = vmatpush.msra.mxu0 0.0
    %932 = vmatpush.msra.mxu0 0.0
    %933 = vmatpush.msra.mxu0 0.0
    %934 = vmatpush.msra.mxu0 0.0
    %935 = vmatpush.msra.mxu0 0.0
    %936 = vmatpush.msra.mxu0 0.0
    %937 = vmatpush.msra.mxu0 0.0
    %938 = vmatpush.msra.mxu0 0.0
    %939 = vmatpush.msra.mxu0 0.0
    %940 = vmatpush.msra.mxu0 0.0
    %941 = vmatpush.msra.mxu0 0.0
    %942 = vmatpush.msra.mxu0 %v130
    %943 = vmatpush.msra.mxu0 %v129
    %944 = vmatpush.msra.mxu0 %v128
    %945 = vmatpush.msra.mxu0 %v127
    %946 = vmatmul.f32.gmra.mxu0 %v928
    %v947 = vpop.f32.mrf.mxu0
    %v948 = vadd.f32 0.0, %v947
    %949 = vdwg.mxu0
    %v950 = vadd.f32 %v923, %v948
    %v951 = vxor.u32 %v950, 2147483648
    %v952 = vmul.f32 %v951, 1.442695
    %v953 = vpow.pop %v952
    %v954 = vadd.f32 %v953, 1.0
    %v955 = vrcp.pop %v954
    %v956 = vmul.f32 %v954, %v955
    %v957 = vsub.f32 1.0, %v956
    %v958 = vmul.f32 %v955, %v957
    %v959 = vadd.f32 %v955, %v958
    %vm960 = vweird.f32 %v954
    %vm961 = vweird.f32 %v955
    %vm962 = vmor %vm960, %vm961
    %v963 = vsel %vm962, %v955, %v959
    %v964 = vand.u32 2147483647, %v954
    %vm965 = vcmp.eq.f32.partialorder %v964, 8.507059e+37
    %v966 = vand.u32 %v954, 2147483648
    %v967 = vor.u32 1.1754944e-38, %v966
    %v968 = vsel %vm965, %v967, %v963
    %v969 = vmul.f32 1.0, %v968
    %v970 = vtanh.pop %v950
    %v971 = vmul.f32 %v969, %v829
    %973 = vrot.lane.b32.xlu0 %v970, 64
    %v974 = vpop.permute.xlu0 %973
    %v976 = vmul.f32 %v969, %v974
    %978 = vrot.lane.b32.xlu0 %v976, 32
    %v979 = vpop.permute.xlu0 %978
    %v981 = vadd.f32 %v971, %v979
    %v982 = vtanh.pop %v981
    %984 = vrot.lane.b32.xlu0 %v982, 64
    %v985 = vpop.permute.xlu0 %984
    %v987 = vmul.f32 %v969, %v985
    %v989 = vrot.slane %v904, 2
    %990 = vrot.lane.b32.xlu0 %v989, 32
    %v991 = vpop.permute.xlu0 %990
    %v992 = vsel %vm168, %v991, 0
    %994 = vmatpush.msra.mxu0 0.0
    %995 = vmatpush.msra.mxu0 0.0
    %996 = vmatpush.msra.mxu0 0.0
    %997 = vmatpush.msra.mxu0 0.0
    %998 = vmatpush.msra.mxu0 0.0
    %999 = vmatpush.msra.mxu0 0.0
    %1000 = vmatpush.msra.mxu0 0.0
    %1001 = vmatpush.msra.mxu0 0.0
    %1002 = vmatpush.msra.mxu0 0.0
    %1003 = vmatpush.msra.mxu0 0.0
    %1004 = vmatpush.msra.mxu0 0.0
    %1005 = vmatpush.msra.mxu0 0.0
    %1006 = vmatpush.msra.mxu0 %v126
    %1007 = vmatpush.msra.mxu0 %v125
    %1008 = vmatpush.msra.mxu0 %v124
    %1009 = vmatpush.msra.mxu0 %v123
    %1010 = vmatmul.f32.gmra.mxu0 %v992
    %v1011 = vpop.f32.mrf.mxu0
    %v1012 = vadd.f32 0.0, %v1011
    %1013 = vdwg.mxu0
    %v1015 = vrot.slane %v1012, 4
    %v1017 = vadd.f32 %v166, %v1015
    %v1018 = vxor.u32 %v1017, 2147483648
    %v1019 = vmul.f32 %v1018, 1.442695
    %v1020 = vpow.pop %v1019
    %v1021 = vadd.f32 %v1020, 1.0
    %v1022 = vrcp.pop %v1021
    %v1023 = vmul.f32 %v1021, %v1022
    %v1024 = vsub.f32 1.0, %v1023
    %v1025 = vmul.f32 %v1022, %v1024
    %v1026 = vadd.f32 %v1022, %v1025
    %vm1027 = vweird.f32 %v1021
    %vm1028 = vweird.f32 %v1022
    %vm1029 = vmor %vm1027, %vm1028
    %v1030 = vsel %vm1029, %v1022, %v1026
    %v1031 = vand.u32 2147483647, %v1021
    %vm1032 = vcmp.eq.f32.partialorder %v1031, 8.507059e+37
    %v1033 = vand.u32 %v1021, 2147483648
    %v1034 = vor.u32 1.1754944e-38, %v1033
    %v1035 = vsel %vm1032, %v1034, %v1030
    %v1036 = vmul.f32 1.0, %v1035
    %v1037 = vtanh.pop %v1017
    %v1039 = vrot.slane %v898, 6
    %v1041 = vmul.f32 %v1036, %v1039
    %1043 = vrot.lane.b32.xlu0 %v1037, 64
    %v1044 = vpop.permute.xlu0 %1043
    %v1046 = vmul.f32 %v1036, %v1044
    %1048 = vrot.lane.b32.xlu0 %v1046, 32
    %v1049 = vpop.permute.xlu0 %1048
    %v1051 = vadd.f32 %v1041, %v1049
    %v1052 = vtanh.pop %v1051
    %1054 = vrot.lane.b32.xlu0 %v1052, 64
    %v1055 = vpop.permute.xlu0 %1054
    %v1057 = vmul.f32 %v1036, %v1055
    %1058 = vmatpush.msra.mxu0 0.0
    %1059 = vmatpush.msra.mxu0 0.0
    %1060 = vmatpush.msra.mxu0 0.0
    %1061 = vmatpush.msra.mxu0 0.0
    %1062 = vmatpush.msra.mxu0 0.0
    %1063 = vmatpush.msra.mxu0 0.0
    %1064 = vmatpush.msra.mxu0 0.0
    %1065 = vmatpush.msra.mxu0 0.0
    %1066 = vmatpush.msra.mxu0 0.0
    %1067 = vmatpush.msra.mxu0 0.0
    %1068 = vmatpush.msra.mxu0 0.0
    %1069 = vmatpush.msra.mxu0 0.0
    %1070 = vmatpush.msra.mxu0 %v122
    %1071 = vmatpush.msra.mxu0 %v121
    %1072 = vmatpush.msra.mxu0 %v120
    %1073 = vmatpush.msra.mxu0 %v119
    %1074 = vmatmul.f32.gmra.mxu0 %v992
    %v1075 = vpop.f32.mrf.mxu0
    %v1076 = vadd.f32 %v300, %v1075
    %1077 = vdwg.mxu0
    %1079 = vrot.lane.b32.xlu0 %v987, 32
    %v1080 = vpop.permute.xlu0 %1079
    %v1081 = vsel %vm168, %v1080, 0
    %1083 = vmatpush.msra.mxu0 0.0
    %1084 = vmatpush.msra.mxu0 0.0
    %1085 = vmatpush.msra.mxu0 0.0
    %1086 = vmatpush.msra.mxu0 0.0
    %1087 = vmatpush.msra.mxu0 0.0
    %1088 = vmatpush.msra.mxu0 0.0
    %1089 = vmatpush.msra.mxu0 0.0
    %1090 = vmatpush.msra.mxu0 0.0
    %1091 = vmatpush.msra.mxu0 0.0
    %1092 = vmatpush.msra.mxu0 0.0
    %1093 = vmatpush.msra.mxu0 0.0
    %1094 = vmatpush.msra.mxu0 0.0
    %1095 = vmatpush.msra.mxu0 %v130
    %1096 = vmatpush.msra.mxu0 %v129
    %1097 = vmatpush.msra.mxu0 %v128
    %1098 = vmatpush.msra.mxu0 %v127
    %1099 = vmatmul.f32.gmra.mxu0 %v1081
    %v1100 = vpop.f32.mrf.mxu0
    %v1101 = vadd.f32 0.0, %v1100
    %1102 = vdwg.mxu0
    %v1103 = vadd.f32 %v1076, %v1101
    %v1104 = vxor.u32 %v1103, 2147483648
    %v1105 = vmul.f32 %v1104, 1.442695
    %v1106 = vpow.pop %v1105
    %v1107 = vadd.f32 %v1106, 1.0
    %v1108 = vrcp.pop %v1107
    %v1109 = vmul.f32 %v1107, %v1108
    %v1110 = vsub.f32 1.0, %v1109
    %v1111 = vmul.f32 %v1108, %v1110
    %v1112 = vadd.f32 %v1108, %v1111
    %vm1113 = vweird.f32 %v1107
    %vm1114 = vweird.f32 %v1108
    %vm1115 = vmor %vm1113, %vm1114
    %v1116 = vsel %vm1115, %v1108, %v1112
    %v1117 = vand.u32 2147483647, %v1107
    %vm1118 = vcmp.eq.f32.partialorder %v1117, 8.507059e+37
    %v1119 = vand.u32 %v1107, 2147483648
    %v1120 = vor.u32 1.1754944e-38, %v1119
    %v1121 = vsel %vm1118, %v1120, %v1116
    %v1122 = vmul.f32 1.0, %v1121
    %v1123 = vtanh.pop %v1103
    %v1124 = vmul.f32 %v1122, %v981
    %1126 = vrot.lane.b32.xlu0 %v1123, 64
    %v1127 = vpop.permute.xlu0 %1126
    %v1129 = vmul.f32 %v1122, %v1127
    %1131 = vrot.lane.b32.xlu0 %v1129, 32
    %v1132 = vpop.permute.xlu0 %1131
    %v1134 = vadd.f32 %v1124, %v1132
    %v1135 = vtanh.pop %v1134
    %1137 = vrot.lane.b32.xlu0 %v1135, 64
    %v1138 = vpop.permute.xlu0 %1137
    %v1140 = vmul.f32 %v1122, %v1138
    %v1142 = vrot.slane %v1057, 4
    %1143 = vrot.lane.b32.xlu0 %v1142, 32
    %v1144 = vpop.permute.xlu0 %1143
    %v1145 = vsel %vm168, %v1144, 0
    %1147 = vmatpush.msra.mxu0 0.0
    %1148 = vmatpush.msra.mxu0 0.0
    %1149 = vmatpush.msra.mxu0 0.0
    %1150 = vmatpush.msra.mxu0 0.0
    %1151 = vmatpush.msra.mxu0 0.0
    %1152 = vmatpush.msra.mxu0 0.0
    %1153 = vmatpush.msra.mxu0 0.0
    %1154 = vmatpush.msra.mxu0 0.0
    %1155 = vmatpush.msra.mxu0 0.0
    %1156 = vmatpush.msra.mxu0 0.0
    %1157 = vmatpush.msra.mxu0 0.0
    %1158 = vmatpush.msra.mxu0 0.0
    %1159 = vmatpush.msra.mxu0 %v126
    %1160 = vmatpush.msra.mxu0 %v125
    %1161 = vmatpush.msra.mxu0 %v124
    %1162 = vmatpush.msra.mxu0 %v123
    %1163 = vmatmul.f32.gmra.mxu0 %v1145
    %v1164 = vpop.f32.mrf.mxu0
    %v1165 = vadd.f32 0.0, %v1164
    %1166 = vdwg.mxu0
    %v1168 = vrot.slane %v1165, 2
    %v1170 = vadd.f32 %v166, %v1168
    %v1171 = vxor.u32 %v1170, 2147483648
    %v1172 = vmul.f32 %v1171, 1.442695
    %v1173 = vpow.pop %v1172
    %v1174 = vadd.f32 %v1173, 1.0
    %v1175 = vrcp.pop %v1174
    %v1176 = vmul.f32 %v1174, %v1175
    %v1177 = vsub.f32 1.0, %v1176
    %v1178 = vmul.f32 %v1175, %v1177
    %v1179 = vadd.f32 %v1175, %v1178
    %vm1180 = vweird.f32 %v1174
    %vm1181 = vweird.f32 %v1175
    %vm1182 = vmor %vm1180, %vm1181
    %v1183 = vsel %vm1182, %v1175, %v1179
    %v1184 = vand.u32 2147483647, %v1174
    %vm1185 = vcmp.eq.f32.partialorder %v1184, 8.507059e+37
    %v1186 = vand.u32 %v1174, 2147483648
    %v1187 = vor.u32 1.1754944e-38, %v1186
    %v1188 = vsel %vm1185, %v1187, %v1183
    %v1189 = vmul.f32 1.0, %v1188
    %v1190 = vtanh.pop %v1170
    %v1192 = vrot.slane %v1051, 6
    %v1194 = vmul.f32 %v1189, %v1192
    %1196 = vrot.lane.b32.xlu0 %v1190, 64
    %v1197 = vpop.permute.xlu0 %1196
    %v1199 = vmul.f32 %v1189, %v1197
    %1201 = vrot.lane.b32.xlu0 %v1199, 32
    %v1202 = vpop.permute.xlu0 %1201
    %v1204 = vadd.f32 %v1194, %v1202
    %v1205 = vtanh.pop %v1204
    %1207 = vrot.lane.b32.xlu0 %v1205, 64
    %v1208 = vpop.permute.xlu0 %1207
    %v1210 = vmul.f32 %v1189, %v1208
    %1211 = vmatpush.msra.mxu0 0.0
    %1212 = vmatpush.msra.mxu0 0.0
    %1213 = vmatpush.msra.mxu0 0.0
    %1214 = vmatpush.msra.mxu0 0.0
    %1215 = vmatpush.msra.mxu0 0.0
    %1216 = vmatpush.msra.mxu0 0.0
    %1217 = vmatpush.msra.mxu0 0.0
    %1218 = vmatpush.msra.mxu0 0.0
    %1219 = vmatpush.msra.mxu0 0.0
    %1220 = vmatpush.msra.mxu0 0.0
    %1221 = vmatpush.msra.mxu0 0.0
    %1222 = vmatpush.msra.mxu0 0.0
    %1223 = vmatpush.msra.mxu0 %v122
    %1224 = vmatpush.msra.mxu0 %v121
    %1225 = vmatpush.msra.mxu0 %v120
    %1226 = vmatpush.msra.mxu0 %v119
    %1227 = vmatmul.f32.gmra.mxu0 %v1145
    %v1228 = vpop.f32.mrf.mxu0
    %v1229 = vadd.f32 %v300, %v1228
    %1230 = vdwg.mxu0
    %1232 = vrot.lane.b32.xlu0 %v1140, 32
    %v1233 = vpop.permute.xlu0 %1232
    %v1234 = vsel %vm168, %v1233, 0
    %1236 = vmatpush.msra.mxu0 0.0
    %1237 = vmatpush.msra.mxu0 0.0
    %1238 = vmatpush.msra.mxu0 0.0
    %1239 = vmatpush.msra.mxu0 0.0
    %1240 = vmatpush.msra.mxu0 0.0
    %1241 = vmatpush.msra.mxu0 0.0
    %1242 = vmatpush.msra.mxu0 0.0
    %1243 = vmatpush.msra.mxu0 0.0
    %1244 = vmatpush.msra.mxu0 0.0
    %1245 = vmatpush.msra.mxu0 0.0
    %1246 = vmatpush.msra.mxu0 0.0
    %1247 = vmatpush.msra.mxu0 0.0
    %1248 = vmatpush.msra.mxu0 %v130
    %1249 = vmatpush.msra.mxu0 %v129
    %1250 = vmatpush.msra.mxu0 %v128
    %1251 = vmatpush.msra.mxu0 %v127
    %1252 = vmatmul.f32.gmra.mxu0 %v1234
    %v1253 = vpop.f32.mrf.mxu0
    %v1254 = vadd.f32 0.0, %v1253
    %1255 = vdwg.mxu0
    %v1256 = vadd.f32 %v1229, %v1254
    %v1257 = vxor.u32 %v1256, 2147483648
    %v1258 = vmul.f32 %v1257, 1.442695
    %v1259 = vpow.pop %v1258
    %v1260 = vadd.f32 %v1259, 1.0
    %v1261 = vrcp.pop %v1260
    %v1262 = vmul.f32 %v1260, %v1261
    %v1263 = vsub.f32 1.0, %v1262
    %v1264 = vmul.f32 %v1261, %v1263
    %v1265 = vadd.f32 %v1261, %v1264
    %vm1266 = vweird.f32 %v1260
    %vm1267 = vweird.f32 %v1261
    %vm1268 = vmor %vm1266, %vm1267
    %v1269 = vsel %vm1268, %v1261, %v1265
    %v1270 = vand.u32 2147483647, %v1260
    %vm1271 = vcmp.eq.f32.partialorder %v1270, 8.507059e+37
    %v1272 = vand.u32 %v1260, 2147483648
    %v1273 = vor.u32 1.1754944e-38, %v1272
    %v1274 = vsel %vm1271, %v1273, %v1269
    %v1275 = vmul.f32 1.0, %v1274
    %v1276 = vtanh.pop %v1256
    %v1277 = vmul.f32 %v1275, %v1134
    %1279 = vrot.lane.b32.xlu0 %v1276, 64
    %v1280 = vpop.permute.xlu0 %1279
    %v1282 = vmul.f32 %v1275, %v1280
    %1284 = vrot.lane.b32.xlu0 %v1282, 32
    %v1285 = vpop.permute.xlu0 %1284
    %v1287 = vadd.f32 %v1277, %v1285
    %v1288 = vtanh.pop %v1287
    %1290 = vrot.lane.b32.xlu0 %v1288, 64
    %v1291 = vpop.permute.xlu0 %1290
    %v1293 = vmul.f32 %v1275, %v1291
    %v1295 = vrot.slane %v1210, 6
    %1296 = vrot.lane.b32.xlu0 %v1295, 32
    %v1297 = vpop.permute.xlu0 %1296
    %v1298 = vsel %vm168, %v1297, 0
    %1300 = vmatpush.msra.mxu0 0.0
    %1301 = vmatpush.msra.mxu0 0.0
    %1302 = vmatpush.msra.mxu0 0.0
    %1303 = vmatpush.msra.mxu0 0.0
    %1304 = vmatpush.msra.mxu0 0.0
    %1305 = vmatpush.msra.mxu0 0.0
    %1306 = vmatpush.msra.mxu0 0.0
    %1307 = vmatpush.msra.mxu0 0.0
    %1308 = vmatpush.msra.mxu0 0.0
    %1309 = vmatpush.msra.mxu0 0.0
    %1310 = vmatpush.msra.mxu0 0.0
    %1311 = vmatpush.msra.mxu0 0.0
    %1312 = vmatpush.msra.mxu0 %v122
    %1313 = vmatpush.msra.mxu0 %v121
    %1314 = vmatpush.msra.mxu0 %v120
    %1315 = vmatpush.msra.mxu0 %v119
    %1316 = vmatmul.f32.gmra.mxu0 %v1298
    %v1317 = vpop.f32.mrf.mxu0
    %v1318 = vadd.f32 %v300, %v1317
    %1319 = vdwg.mxu0
    %1321 = vrot.lane.b32.xlu0 %v1293, 32
    %v1322 = vpop.permute.xlu0 %1321
    %v1323 = vsel %vm168, %v1322, 0
    %1325 = vmatpush.msra.mxu0 0.0
    %1326 = vmatpush.msra.mxu0 0.0
    %1327 = vmatpush.msra.mxu0 0.0
    %1328 = vmatpush.msra.mxu0 0.0
    %1329 = vmatpush.msra.mxu0 0.0
    %1330 = vmatpush.msra.mxu0 0.0
    %1331 = vmatpush.msra.mxu0 0.0
    %1332 = vmatpush.msra.mxu0 0.0
    %1333 = vmatpush.msra.mxu0 0.0
    %1334 = vmatpush.msra.mxu0 0.0
    %1335 = vmatpush.msra.mxu0 0.0
    %1336 = vmatpush.msra.mxu0 0.0
    %1337 = vmatpush.msra.mxu0 %v130
    %1338 = vmatpush.msra.mxu0 %v129
    %1339 = vmatpush.msra.mxu0 %v128
    %1340 = vmatpush.msra.mxu0 %v127
    %1341 = vmatmul.f32.gmra.mxu0 %v1323
    %v1342 = vpop.f32.mrf.mxu0
    %v1343 = vadd.f32 0.0, %v1342
    %1344 = vdwg.mxu0
    %v1345 = vadd.f32 %v1318, %v1343
    %v1346 = vxor.u32 %v1345, 2147483648
    %v1347 = vmul.f32 %v1346, 1.442695
    %v1348 = vpow.pop %v1347
    %v1349 = vadd.f32 %v1348, 1.0
    %v1350 = vrcp.pop %v1349
    %v1351 = vmul.f32 %v1349, %v1350
    %v1352 = vsub.f32 1.0, %v1351
    %v1353 = vmul.f32 %v1350, %v1352
    %v1354 = vadd.f32 %v1350, %v1353
    %vm1355 = vweird.f32 %v1349
    %vm1356 = vweird.f32 %v1350
    %vm1357 = vmor %vm1355, %vm1356
    %v1358 = vsel %vm1357, %v1350, %v1354
    %v1359 = vand.u32 2147483647, %v1349
    %vm1360 = vcmp.eq.f32.partialorder %v1359, 8.507059e+37
    %v1361 = vand.u32 %v1349, 2147483648
    %v1362 = vor.u32 1.1754944e-38, %v1361
    %v1363 = vsel %vm1360, %v1362, %v1358
    %v1364 = vmul.f32 1.0, %v1363
    %v1365 = vtanh.pop %v1345
    %v1366 = vmul.f32 %v1364, %v1287
    %1368 = vrot.lane.b32.xlu0 %v1365, 64
    %v1369 = vpop.permute.xlu0 %1368
    %v1371 = vmul.f32 %v1364, %v1369
    %1373 = vrot.lane.b32.xlu0 %v1371, 32
    %v1374 = vpop.permute.xlu0 %1373
    %v1376 = vadd.f32 %v1366, %v1374
    %v1377 = vtanh.pop %v1376
    %1379 = vrot.lane.b32.xlu0 %v1377, 64
    %v1380 = vpop.permute.xlu0 %1379
    %v1382 = vmul.f32 %v1364, %v1380
    %v1383 = vmax.f32 %v1382, 0.0
    %v1384 = vld [vmem:[#allocation10] sm:$0xff]
    %v1385 = vld [vmem:[#allocation10 + $0x8] sm:$0xff]
    %v1386 = vld [vmem:[#allocation10 + $0x10] sm:$0xff]
    %v1387 = vld [vmem:[#allocation10 + $0x18] sm:$0xff]
    %v1388 = vld [vmem:[%s8] sm:$0x1]
    %v1390 = vperm.slane %v1388, 0
    %1393 = vrot.lane.b32.xlu0 %v1383, 32
    %v1394 = vpop.permute.xlu0 %1393
    %v1395 = vsel %vm168, %v1394, 0
    %1397 = vmatpush.msra.mxu0 0.0
    %1398 = vmatpush.msra.mxu0 0.0
    %1399 = vmatpush.msra.mxu0 0.0
    %1400 = vmatpush.msra.mxu0 0.0
    %1401 = vmatpush.msra.mxu0 0.0
    %1402 = vmatpush.msra.mxu0 0.0
    %1403 = vmatpush.msra.mxu0 0.0
    %1404 = vmatpush.msra.mxu0 0.0
    %1405 = vmatpush.msra.mxu0 0.0
    %1406 = vmatpush.msra.mxu0 0.0
    %1407 = vmatpush.msra.mxu0 0.0
    %1408 = vmatpush.msra.mxu0 0.0
    %1409 = vmatpush.msra.mxu0 %v1387
    %1410 = vmatpush.msra.mxu0 %v1386
    %1411 = vmatpush.msra.mxu0 %v1385
    %1412 = vmatpush.msra.mxu0 %v1384
    %1413 = vmatmul.f32.gmra.mxu0 %v1395
    %v1414 = vpop.f32.mrf.mxu0
    %v1415 = vadd.f32 %v1390, %v1414
    %1416 = vdwg.mxu0
    %v1417 = vmax.f32 %v1415, 0.0
    %v1418 = vld [vmem:[%s9] sm:$0xff]
    %v1419 = vld [vmem:[%s9 + $0x8] sm:$0xff]
    %v1420 = vld [vmem:[%s9 + $0x10] sm:$0xff]
    %v1421 = vld [vmem:[%s9 + $0x18] sm:$0xff]
    %v1422 = vld [vmem:[%s10] sm:$0x1]
    %v1424 = vperm.slane %v1422, 0
    %v1427 = vsel %vm168, %v1417, 0
    %1429 = vmatpush.msra.mxu0 0.0
    %1430 = vmatpush.msra.mxu0 0.0
    %1431 = vmatpush.msra.mxu0 0.0
    %1432 = vmatpush.msra.mxu0 0.0
    %1433 = vmatpush.msra.mxu0 0.0
    %1434 = vmatpush.msra.mxu0 0.0
    %1435 = vmatpush.msra.mxu0 0.0
    %1436 = vmatpush.msra.mxu0 0.0
    %1437 = vmatpush.msra.mxu0 0.0
    %1438 = vmatpush.msra.mxu0 0.0
    %1439 = vmatpush.msra.mxu0 0.0
    %1440 = vmatpush.msra.mxu0 0.0
    %1441 = vmatpush.msra.mxu0 %v1421
    %1442 = vmatpush.msra.mxu0 %v1420
    %1443 = vmatpush.msra.mxu0 %v1419
    %1444 = vmatpush.msra.mxu0 %v1418
    %1445 = vmatmul.f32.gmra.mxu0 %v1427
    %v1446 = vpop.f32.mrf.mxu0
    %v1447 = vadd.f32 %v1424, %v1446
    %1448 = vdwg.mxu0
    %vm1449 = vcmask 58368
    %v1450 = vsel %vm1449, %v1447, -inf
    %1451 = vmax.xlane.f32.xlu0 %v1450
    %v1452 = vpop.xlane.xlu0 %1451
    %v1453 = vsub.f32 %v1447, %v1452
    %v1454 = vmul.f32 %v1453, 1.442695
    %v1455 = vpow.pop %v1454
    %v1456 = vsel %vm1449, %v1455, 0.0
    %1457 = vadd.xlane.f32.xlu0 %v1456
    %v1458 = vpop.xlane.xlu0 %1457
    %v1459 = vrcp.pop %v1458
    %v1460 = vmul.f32 %v1458, %v1459
    %v1461 = vsub.f32 1.0, %v1460
    %v1462 = vmul.f32 %v1459, %v1461
    %v1463 = vadd.f32 %v1459, %v1462
    %vm1464 = vweird.f32 %v1458
    %vm1465 = vweird.f32 %v1459
    %vm1466 = vmor %vm1464, %vm1465
    %v1467 = vsel %vm1466, %v1459, %v1463
    %v1468 = vand.u32 2147483647, %v1458
    %vm1469 = vcmp.eq.f32.partialorder %v1468, 8.507059e+37
    %v1470 = vand.u32 %v1458, 2147483648
    %v1471 = vor.u32 1.1754944e-38, %v1470
    %v1472 = vsel %vm1469, %v1471, %v1467
    %v1473 = vmul.f32 %v1455, %v1472
    %1474 = vst.msk [vmem:[#allocation11] sm:$0x3] %vm1449, %v1473
    // Predicated region
    $region66: #{tpu_custom_call.1} parent=1 // pred_check
      _
    $region67: #{tpu_custom_call.1} parent=1 // pred_check_branch
      %1476 = sbr.rel (0) target = $region69
    $region68: #{tpu_custom_call.1} parent=1 // pred_region
      %1478 = vsyncadd [#allocation4], 0
      %s1480 = sshll.u32 [#allocation11], 4
      %s1481 = int_to_ptr.vmem [resolvable:$true] %s1480
      %s1482 = sshll.u32 %s11, 4
      %s1483 = int_to_ptr.hbm [resolvable:$true] %s1482
      %1485 = dma.vmem_to_hbm [thread:$0]  %s1481, 32, %s1483, [#allocation4]
    $region69: #{tpu_custom_call.1} parent=1 // pred_fallthru
      _
    // Predicated region
    $region70: #{tpu_custom_call.1} parent=1 // pred_check
      _
    $region71: #{tpu_custom_call.1} parent=1 // pred_check_branch
      %1487 = sbr.rel (0) target = $region73
    $region72: #{tpu_custom_call.1} parent=1 // pred_region
      %1489 = dma.done [#allocation4], 32
    $region73: #{tpu_custom_call.1} parent=1 // pred_fallthru
      _
    %1490 = vsyncpa [#allocation3], 1
    %1491 = vsyncpa [#allocation6], 1
    %1492 = vsyncpa [#allocation9], 1
    %1493 = vsyncpa [#allocation4], 1

</llo_original>
